<compile_context>
chip_gen: v7x
topology: tpu7x:2x2x1
jax: 0.10.0
libtpu: 0.0.40
codegen_flags: <defaults>
</compile_context>

<pallas_src>
import functools

import jax
import jax.numpy as jnp
from jax import lax
from jax.experimental import pallas as pl
from jax.experimental.pallas import tpu as pltpu

# (ky-1, kx-1) offsets of the 9 conv taps, ky/kx-major to match the weight reshape.
_TAPS = tuple((ky - 1, kx - 1) for ky in range(3) for kx in range(3))

# bf16 matmul inputs (f32 accumulation) roughly double MXU throughput on v6e/v7x.
# Kept f32 here so the strict correctness check below stays tight.
# TODO(synk): flip to jnp.bfloat16 for v6e/v7x deployments.
_MATMUL_DTYPE = jnp.float32


def basic_block_kernel(x_ref, mask_ref, s1_ref, b1_ref, w1_ref,
                       s2_ref, b2_ref, w2_ref, cb2_ref,
                       o_ref, patch_ref, *, W):
    C, L = x_ref.shape                                       # channels, B_TILE*H*W

    xT = x_ref[...]                                          # (C, L) lane-dense load
    a1 = jnp.maximum(xT * s1_ref[...] + b1_ref[...], 0.0)    # bn1 + relu (full lanes)

    def conv3x3(aT, w_ref):
        # im2col, channel-major: 9 lane-rolled + boundary-masked taps stacked on
        # the sublane axis of a VMEM slab, then ONE fat-K MXU matmul.
        for t, (oy, ox) in enumerate(_TAPS):
            shift = (-(oy * W + ox)) % L                     # static python int
            rolled = pltpu.roll(aT, shift, axis=1) if shift else aT
            patch_ref[t * C:(t + 1) * C, :] = rolled * mask_ref[t:t + 1, :]
        return jnp.dot(w_ref[...].astype(_MATMUL_DTYPE),
                       patch_ref[...].astype(_MATMUL_DTYPE),
                       preferred_element_type=jnp.float32)   # (C, L)

    y1 = conv3x3(a1, w1_ref)                                 # conv1 (bias folded into b2)
    a2 = jnp.maximum(y1 * s2_ref[...] + b2_ref[...], 0.0)    # bn2(conv1+b) + relu
    y2 = conv3x3(a2, w2_ref)                                 # conv2

    # conv2 bias + identity residual, stored lane-dense.
    # TODO(synk): stride>1 / downsample identity path not implemented (module is
    # instantiated with stride=1, downsample=None).
    o_ref[...] = y2 + cb2_ref[...] + xT


def _pick_batch_tile(n, max_tile=8):
    """Largest divisor of n that is <= max_tile (images fused per grid step)."""
    best = 1
    for t in range(2, min(n, max_tile) + 1):
        if n % t == 0:
            best = t
    return best


def basic_block_forward(x_nchw, params, *, max_batch_tile=8):
    """Fused BasicBlock forward. x_nchw: (N, C, H, W) float32 (PyTorch NCHW)."""
    x_nchw = x_nchw.astype(jnp.float32)
    N, Cin, H, W = x_nchw.shape
    w1, w2 = params["conv1_w"], params["conv2_w"]            # OIHW
    Cout = w1.shape[0]
    assert Cin == Cout, "identity residual requires c_in == c_out (downsample=None)"

    eps = 1e-5
    s1 = params["bn1_gamma"] / jnp.sqrt(params["bn1_var"] + eps)
    b1 = params["bn1_beta"] - params["bn1_mean"] * s1
    s2 = params["bn2_gamma"] / jnp.sqrt(params["bn2_var"] + eps)
    b2 = params["bn2_beta"] - params["bn2_mean"] * s2
    b2 = b2 + s2 * params["conv1_b"]                         # fold conv1 bias thru bn2

    # Channel-major layout: (C, N*H*W) puts the long spatial axis on lanes.
    xT = jnp.transpose(x_nchw, (1, 0, 2, 3)).reshape(Cin, N * H * W)
    # OIHW -> (O, ky, kx, I) -> (O, 9*I): column index (ky*3+kx)*Cin + i.
    w1T = jnp.transpose(w1, (0, 2, 3, 1)).reshape(Cout, 9 * Cin).astype(jnp.float32)
    w2T = jnp.transpose(w2, (0, 2, 3, 1)).reshape(Cout, 9 * Cout).astype(jnp.float32)

    B = _pick_batch_tile(N, max_batch_tile)                  # images per grid step
    L = B * H * W                                            # lane extent of a block
    assert N % B == 0
    assert (N == B) or (L % 128 == 0), "batch-tile lane extent must be lane-aligned"
    # NOTE(v7x): with 2 TensorCores prefer N // B >= 2 (even); the "parallel"
    # semantics below lets megacore shard the batch-tile grid axis.

    # Precomputed 0/1 zero-padding masks, one lane-row per tap, tiled per image.
    hh = jnp.arange(H)[:, None]
    ww = jnp.arange(W)[None, :]
    rows = []
    for oy, ox in _TAPS:
        ok = (hh + oy >= 0) & (hh + oy < H) & (ww + ox >= 0) & (ww + ox < W)
        rows.append(ok.astype(jnp.float32).reshape(H * W))
    mask = jnp.tile(jnp.stack(rows), (1, B))                 # (9, L)

    col = lambda v: v.reshape(-1, 1).astype(jnp.float32)     # per-channel column
    full = lambda shape: pl.BlockSpec(shape, lambda n: (0, 0))

    outT = pl.pallas_call(
        functools.partial(basic_block_kernel, W=W),
        grid=(N // B,),
        in_specs=[
            pl.BlockSpec((Cin, L), lambda n: (0, n)),        # x, lane-dense
            full((9, L)),                                    # tap masks
            full((Cin, 1)), full((Cin, 1)),                  # bn1 scale / bias
            full((Cout, 9 * Cin)),                           # conv1 weight
            full((Cout, 1)), full((Cout, 1)),                # bn2 scale / bias(+conv1 b)
            full((Cout, 9 * Cout)),                          # conv2 weight
            full((Cout, 1)),                                 # conv2 bias
        ],
        out_specs=pl.BlockSpec((Cout, L), lambda n: (0, n)), # lane-dense stores
        out_shape=jax.ShapeDtypeStruct((Cout, N * H * W), jnp.float32),
        scratch_shapes=[pltpu.VMEM((9 * Cin, L), jnp.float32)],   # im2col slab
        compiler_params=pltpu.CompilerParams(dimension_semantics=("parallel",)),
    )(xT, mask, col(s1), col(b1), w1T, col(s2), col(b2), w2T, col(params["conv2_b"]))

    return jnp.transpose(outT.reshape(Cout, N, H, W), (1, 0, 2, 3))   # back to NCHW


def reference_forward(x_nchw, params):
    """Plain-JAX reference (same semantics) for a correctness check."""
    eps = 1e-5
    x = jnp.transpose(x_nchw, (0, 2, 3, 1)).astype(jnp.float32)

    def bn(v, g, b, m, var):
        return (v - m) / jnp.sqrt(var + eps) * g + b

    dn = ("NHWC", "HWIO", "NHWC")
    w1 = jnp.transpose(params["conv1_w"], (2, 3, 1, 0))
    w2 = jnp.transpose(params["conv2_w"], (2, 3, 1, 0))

    a1 = jax.nn.relu(bn(x, params["bn1_gamma"], params["bn1_beta"],
                        params["bn1_mean"], params["bn1_var"]))
    y1 = lax.conv_general_dilated(a1, w1, (1, 1), "SAME",
                                  dimension_numbers=dn) + params["conv1_b"]
    a2 = jax.nn.relu(bn(y1, params["bn2_gamma"], params["bn2_beta"],
                        params["bn2_mean"], params["bn2_var"]))
    y2 = lax.conv_general_dilated(a2, w2, (1, 1), "SAME",
                                  dimension_numbers=dn) + params["conv2_b"]
    out = y2 + x
    return jnp.transpose(out, (0, 3, 1, 2))


if __name__ == "__main__":
    N, C, H, W = 2, 4, 16, 16          # c_in == c_out, stride=1, downsample=None
    key = jax.random.PRNGKey(0)
    ks = jax.random.split(key, 14)

    params = {
        "bn1_gamma": 1.0 + 0.1 * jax.random.normal(ks[0], (C,), jnp.float32),
        "bn1_beta": 0.1 * jax.random.normal(ks[1], (C,), jnp.float32),
        "bn1_mean": 0.1 * jax.random.normal(ks[2], (C,), jnp.float32),
        "bn1_var": jax.random.uniform(ks[3], (C,), jnp.float32, 0.5, 1.5),
        "conv1_w": 0.1 * jax.random.normal(ks[4], (C, C, 3, 3), jnp.float32),
        "conv1_b": 0.1 * jax.random.normal(ks[5], (C,), jnp.float32),
        "bn2_gamma": 1.0 + 0.1 * jax.random.normal(ks[6], (C,), jnp.float32),
        "bn2_beta": 0.1 * jax.random.normal(ks[7], (C,), jnp.float32),
        "bn2_mean": 0.1 * jax.random.normal(ks[8], (C,), jnp.float32),
        "bn2_var": jax.random.uniform(ks[9], (C,), jnp.float32, 0.5, 1.5),
        "conv2_w": 0.1 * jax.random.normal(ks[10], (C, C, 3, 3), jnp.float32),
        "conv2_b": 0.1 * jax.random.normal(ks[11], (C,), jnp.float32),
    }
    x = jax.random.normal(ks[12], (N, C, H, W), jnp.float32)

    out = jax.block_until_ready(basic_block_forward(x, params))
    ref = jax.block_until_ready(reference_forward(x, params))

    assert out.shape == (N, C, H, W) and out.dtype == jnp.float32
    if not jnp.allclose(out, ref, atol=1e-3, rtol=1e-3):
        raise AssertionError("Pallas kernel output mismatch vs reference")
    print("KERNEL_OK")
</pallas_src>

<mosaic_0001>
module attributes {stable_mosaic.version = 11 : i64} {
  func.func @basic_block_kernel(%arg0: i32, %arg1: memref<4x512xf32, #tpu.memory_space<vmem>>, %arg2: memref<9x512xf32, #tpu.memory_space<vmem>>, %arg3: memref<4x1xf32, #tpu.memory_space<vmem>>, %arg4: memref<4x1xf32, #tpu.memory_space<vmem>>, %arg5: memref<4x36xf32, #tpu.memory_space<vmem>>, %arg6: memref<4x1xf32, #tpu.memory_space<vmem>>, %arg7: memref<4x1xf32, #tpu.memory_space<vmem>>, %arg8: memref<4x36xf32, #tpu.memory_space<vmem>>, %arg9: memref<4x1xf32, #tpu.memory_space<vmem>>, %arg10: memref<4x512xf32, #tpu.memory_space<vmem>>, %arg11: memref<36x512xf32, #tpu.memory_space<vmem>>) attributes {dimension_semantics = [#tpu.dimension_semantics<parallel>], iteration_bounds = array<i64: 1>, scalar_prefetch = 0 : i64, scratch_operands = 1 : i64, tpu.core_type = #tpu.core_type<tc>, window_params = [{transform_indices = @transform_0, window_bounds = array<i64: 4, 512>}, {pipeline_mode = #tpu.pipeline_mode<synchronous>, transform_indices = @transform_1, window_bounds = array<i64: 9, 512>}, {pipeline_mode = #tpu.pipeline_mode<synchronous>, transform_indices = @transform_2, window_bounds = array<i64: 4, 1>}, {pipeline_mode = #tpu.pipeline_mode<synchronous>, transform_indices = @transform_3, window_bounds = array<i64: 4, 1>}, {pipeline_mode = #tpu.pipeline_mode<synchronous>, transform_indices = @transform_4, window_bounds = array<i64: 4, 36>}, {pipeline_mode = #tpu.pipeline_mode<synchronous>, transform_indices = @transform_5, window_bounds = array<i64: 4, 1>}, {pipeline_mode = #tpu.pipeline_mode<synchronous>, transform_indices = @transform_6, window_bounds = array<i64: 4, 1>}, {pipeline_mode = #tpu.pipeline_mode<synchronous>, transform_indices = @transform_7, window_bounds = array<i64: 4, 36>}, {pipeline_mode = #tpu.pipeline_mode<synchronous>, transform_indices = @transform_8, window_bounds = array<i64: 4, 1>}, {transform_indices = @transform_9, window_bounds = array<i64: 4, 512>}]} {
    %c0 = arith.constant 0 : index
    %c0_0 = arith.constant 0 : index
    %0 = vector.load %arg1[%c0, %c0_0] : memref<4x512xf32, #tpu.memory_space<vmem>>, vector<4x512xf32>
    %c0_1 = arith.constant 0 : index
    %c0_2 = arith.constant 0 : index
    %1 = vector.load %arg3[%c0_1, %c0_2] : memref<4x1xf32, #tpu.memory_space<vmem>>, vector<4x1xf32>
    %2 = vector.broadcast %1 : vector<4x1xf32> to vector<4x512xf32>
    %3 = arith.mulf %0, %2 : vector<4x512xf32>
    %c0_3 = arith.constant 0 : index
    %c0_4 = arith.constant 0 : index
    %4 = vector.load %arg4[%c0_3, %c0_4] : memref<4x1xf32, #tpu.memory_space<vmem>>, vector<4x1xf32>
    %5 = vector.broadcast %4 : vector<4x1xf32> to vector<4x512xf32>
    %6 = arith.addf %3, %5 : vector<4x512xf32>
    %cst = arith.constant 0.000000e+00 : f32
    %7 = vector.broadcast %cst : f32 to vector<4x512xf32>
    %8 = arith.maximumf %6, %7 : vector<4x512xf32>
    %c17_i32 = arith.constant 17 : i32
    %9 = tpu.dynamic_rotate %8 by %c17_i32 dim 1 : vector<4x512xf32>, i32 -> vector<4x512xf32>
    %c0_5 = arith.constant 0 : index
    %c0_6 = arith.constant 0 : index
    %10 = vector.load %arg2[%c0_5, %c0_6] : memref<9x512xf32, #tpu.memory_space<vmem>>, vector<1x512xf32>
    %11 = vector.broadcast %10 : vector<1x512xf32> to vector<4x512xf32>
    %12 = arith.mulf %9, %11 : vector<4x512xf32>
    %c0_7 = arith.constant 0 : index
    %c0_8 = arith.constant 0 : index
    %13 = vector.load %arg11[%c0_7, %c0_8] : memref<36x512xf32, #tpu.memory_space<vmem>>, vector<4x512xf32>
    tpu.vector_store %arg11[%c0_7, %c0_8], %12 {strides = array<i32>} : memref<36x512xf32, #tpu.memory_space<vmem>>, vector<4x512xf32>,
    %c16_i32 = arith.constant 16 : i32
    %14 = tpu.dynamic_rotate %8 by %c16_i32 dim 1 : vector<4x512xf32>, i32 -> vector<4x512xf32>
    %c1 = arith.constant 1 : index
    %c0_9 = arith.constant 0 : index
    %15 = vector.load %arg2[%c1, %c0_9] : memref<9x512xf32, #tpu.memory_space<vmem>>, vector<1x512xf32>
    %16 = vector.broadcast %15 : vector<1x512xf32> to vector<4x512xf32>
    %17 = arith.mulf %14, %16 : vector<4x512xf32>
    %c4 = arith.constant 4 : index
    %c0_10 = arith.constant 0 : index
    %18 = vector.load %arg11[%c4, %c0_10] : memref<36x512xf32, #tpu.memory_space<vmem>>, vector<4x512xf32>
    tpu.vector_store %arg11[%c4, %c0_10], %17 {strides = array<i32>} : memref<36x512xf32, #tpu.memory_space<vmem>>, vector<4x512xf32>,
    %c15_i32 = arith.constant 15 : i32
    %19 = tpu.dynamic_rotate %8 by %c15_i32 dim 1 : vector<4x512xf32>, i32 -> vector<4x512xf32>
    %c2 = arith.constant 2 : index
    %c0_11 = arith.constant 0 : index
    %20 = vector.load %arg2[%c2, %c0_11] : memref<9x512xf32, #tpu.memory_space<vmem>>, vector<1x512xf32>
    %21 = vector.broadcast %20 : vector<1x512xf32> to vector<4x512xf32>
    %22 = arith.mulf %19, %21 : vector<4x512xf32>
    %c8 = arith.constant 8 : index
    %c0_12 = arith.constant 0 : index
    %23 = vector.load %arg11[%c8, %c0_12] : memref<36x512xf32, #tpu.memory_space<vmem>>, vector<4x512xf32>
    tpu.vector_store %arg11[%c8, %c0_12], %22 {strides = array<i32>} : memref<36x512xf32, #tpu.memory_space<vmem>>, vector<4x512xf32>,
    %c1_i32 = arith.constant 1 : i32
    %24 = tpu.dynamic_rotate %8 by %c1_i32 dim 1 : vector<4x512xf32>, i32 -> vector<4x512xf32>
    %c3 = arith.constant 3 : index
    %c0_13 = arith.constant 0 : index
    %25 = vector.load %arg2[%c3, %c0_13] : memref<9x512xf32, #tpu.memory_space<vmem>>, vector<1x512xf32>
    %26 = vector.broadcast %25 : vector<1x512xf32> to vector<4x512xf32>
    %27 = arith.mulf %24, %26 : vector<4x512xf32>
    %c12 = arith.constant 12 : index
    %c0_14 = arith.constant 0 : index
    %28 = vector.load %arg11[%c12, %c0_14] : memref<36x512xf32, #tpu.memory_space<vmem>>, vector<4x512xf32>
    tpu.vector_store %arg11[%c12, %c0_14], %27 {strides = array<i32>} : memref<36x512xf32, #tpu.memory_space<vmem>>, vector<4x512xf32>,
    %c4_15 = arith.constant 4 : index
    %c0_16 = arith.constant 0 : index
    %29 = vector.load %arg2[%c4_15, %c0_16] : memref<9x512xf32, #tpu.memory_space<vmem>>, vector<1x512xf32>
    %30 = vector.broadcast %29 : vector<1x512xf32> to vector<4x512xf32>
    %31 = arith.mulf %8, %30 : vector<4x512xf32>
    %c16 = arith.constant 16 : index
    %c0_17 = arith.constant 0 : index
    %32 = vector.load %arg11[%c16, %c0_17] : memref<36x512xf32, #tpu.memory_space<vmem>>, vector<4x512xf32>
    tpu.vector_store %arg11[%c16, %c0_17], %31 {strides = array<i32>} : memref<36x512xf32, #tpu.memory_space<vmem>>, vector<4x512xf32>,
    %c511_i32 = arith.constant 511 : i32
    %33 = tpu.dynamic_rotate %8 by %c511_i32 dim 1 : vector<4x512xf32>, i32 -> vector<4x512xf32>
    %c5 = arith.constant 5 : index
    %c0_18 = arith.constant 0 : index
    %34 = vector.load %arg2[%c5, %c0_18] : memref<9x512xf32, #tpu.memory_space<vmem>>, vector<1x512xf32>
    %35 = vector.broadcast %34 : vector<1x512xf32> to vector<4x512xf32>
    %36 = arith.mulf %33, %35 : vector<4x512xf32>
    %c20 = arith.constant 20 : index
    %c0_19 = arith.constant 0 : index
    %37 = vector.load %arg11[%c20, %c0_19] : memref<36x512xf32, #tpu.memory_space<vmem>>, vector<4x512xf32>
    tpu.vector_store %arg11[%c20, %c0_19], %36 {strides = array<i32>} : memref<36x512xf32, #tpu.memory_space<vmem>>, vector<4x512xf32>,
    %c497_i32 = arith.constant 497 : i32
    %38 = tpu.dynamic_rotate %8 by %c497_i32 dim 1 : vector<4x512xf32>, i32 -> vector<4x512xf32>
    %c6 = arith.constant 6 : index
    %c0_20 = arith.constant 0 : index
    %39 = vector.load %arg2[%c6, %c0_20] : memref<9x512xf32, #tpu.memory_space<vmem>>, vector<1x512xf32>
    %40 = vector.broadcast %39 : vector<1x512xf32> to vector<4x512xf32>
    %41 = arith.mulf %38, %40 : vector<4x512xf32>
    %c24 = arith.constant 24 : index
    %c0_21 = arith.constant 0 : index
    %42 = vector.load %arg11[%c24, %c0_21] : memref<36x512xf32, #tpu.memory_space<vmem>>, vector<4x512xf32>
    tpu.vector_store %arg11[%c24, %c0_21], %41 {strides = array<i32>} : memref<36x512xf32, #tpu.memory_space<vmem>>, vector<4x512xf32>,
    %c496_i32 = arith.constant 496 : i32
    %43 = tpu.dynamic_rotate %8 by %c496_i32 dim 1 : vector<4x512xf32>, i32 -> vector<4x512xf32>
    %c7 = arith.constant 7 : index
    %c0_22 = arith.constant 0 : index
    %44 = vector.load %arg2[%c7, %c0_22] : memref<9x512xf32, #tpu.memory_space<vmem>>, vector<1x512xf32>
    %45 = vector.broadcast %44 : vector<1x512xf32> to vector<4x512xf32>
    %46 = arith.mulf %43, %45 : vector<4x512xf32>
    %c28 = arith.constant 28 : index
    %c0_23 = arith.constant 0 : index
    %47 = vector.load %arg11[%c28, %c0_23] : memref<36x512xf32, #tpu.memory_space<vmem>>, vector<4x512xf32>
    tpu.vector_store %arg11[%c28, %c0_23], %46 {strides = array<i32>} : memref<36x512xf32, #tpu.memory_space<vmem>>, vector<4x512xf32>,
    %c495_i32 = arith.constant 495 : i32
    %48 = tpu.dynamic_rotate %8 by %c495_i32 dim 1 : vector<4x512xf32>, i32 -> vector<4x512xf32>
    %c8_24 = arith.constant 8 : index
    %c0_25 = arith.constant 0 : index
    %49 = vector.load %arg2[%c8_24, %c0_25] : memref<9x512xf32, #tpu.memory_space<vmem>>, vector<1x512xf32>
    %50 = vector.broadcast %49 : vector<1x512xf32> to vector<4x512xf32>
    %51 = arith.mulf %48, %50 : vector<4x512xf32>
    %c32 = arith.constant 32 : index
    %c0_26 = arith.constant 0 : index
    %52 = vector.load %arg11[%c32, %c0_26] : memref<36x512xf32, #tpu.memory_space<vmem>>, vector<4x512xf32>
    tpu.vector_store %arg11[%c32, %c0_26], %51 {strides = array<i32>} : memref<36x512xf32, #tpu.memory_space<vmem>>, vector<4x512xf32>,
    %c0_27 = arith.constant 0 : index
    %c0_28 = arith.constant 0 : index
    %53 = vector.load %arg5[%c0_27, %c0_28] : memref<4x36xf32, #tpu.memory_space<vmem>>, vector<4x36xf32>
    %c0_29 = arith.constant 0 : index
    %c0_30 = arith.constant 0 : index
    %54 = vector.load %arg11[%c0_29, %c0_30] : memref<36x512xf32, #tpu.memory_space<vmem>>, vector<36x512xf32>
    %cst_31 = arith.constant dense<0.000000e+00> : vector<4x512xf32>
    %55 = tpu.matmul %53, %54, %cst_31 {dimension_numbers = #tpu.dot_dimension_numbers<[1], [0], [0], [1], [0, 0, 1, 1], [], []>} : vector<4x36xf32>, vector<36x512xf32>, vector<4x512xf32> -> vector<4x512xf32>
    %c0_32 = arith.constant 0 : index
    %c0_33 = arith.constant 0 : index
    %56 = vector.load %arg6[%c0_32, %c0_33] : memref<4x1xf32, #tpu.memory_space<vmem>>, vector<4x1xf32>
    %57 = vector.broadcast %56 : vector<4x1xf32> to vector<4x512xf32>
    %58 = arith.mulf %55, %57 : vector<4x512xf32>
    %c0_34 = arith.constant 0 : index
    %c0_35 = arith.constant 0 : index
    %59 = vector.load %arg7[%c0_34, %c0_35] : memref<4x1xf32, #tpu.memory_space<vmem>>, vector<4x1xf32>
    %60 = vector.broadcast %59 : vector<4x1xf32> to vector<4x512xf32>
    %61 = arith.addf %58, %60 : vector<4x512xf32>
    %cst_36 = arith.constant 0.000000e+00 : f32
    %62 = vector.broadcast %cst_36 : f32 to vector<4x512xf32>
    %63 = arith.maximumf %61, %62 : vector<4x512xf32>
    %c17_i32_37 = arith.constant 17 : i32
    %64 = tpu.dynamic_rotate %63 by %c17_i32_37 dim 1 : vector<4x512xf32>, i32 -> vector<4x512xf32>
    %c0_38 = arith.constant 0 : index
    %c0_39 = arith.constant 0 : index
    %65 = vector.load %arg2[%c0_38, %c0_39] : memref<9x512xf32, #tpu.memory_space<vmem>>, vector<1x512xf32>
    %66 = vector.broadcast %65 : vector<1x512xf32> to vector<4x512xf32>
    %67 = arith.mulf %64, %66 : vector<4x512xf32>
    %c0_40 = arith.constant 0 : index
    %c0_41 = arith.constant 0 : index
    %68 = vector.load %arg11[%c0_40, %c0_41] : memref<36x512xf32, #tpu.memory_space<vmem>>, vector<4x512xf32>
    tpu.vector_store %arg11[%c0_40, %c0_41], %67 {strides = array<i32>} : memref<36x512xf32, #tpu.memory_space<vmem>>, vector<4x512xf32>,
    %c16_i32_42 = arith.constant 16 : i32
    %69 = tpu.dynamic_rotate %63 by %c16_i32_42 dim 1 : vector<4x512xf32>, i32 -> vector<4x512xf32>
    %c1_43 = arith.constant 1 : index
    %c0_44 = arith.constant 0 : index
    %70 = vector.load %arg2[%c1_43, %c0_44] : memref<9x512xf32, #tpu.memory_space<vmem>>, vector<1x512xf32>
    %71 = vector.broadcast %70 : vector<1x512xf32> to vector<4x512xf32>
    %72 = arith.mulf %69, %71 : vector<4x512xf32>
    %c4_45 = arith.constant 4 : index
    %c0_46 = arith.constant 0 : index
    %73 = vector.load %arg11[%c4_45, %c0_46] : memref<36x512xf32, #tpu.memory_space<vmem>>, vector<4x512xf32>
    tpu.vector_store %arg11[%c4_45, %c0_46], %72 {strides = array<i32>} : memref<36x512xf32, #tpu.memory_space<vmem>>, vector<4x512xf32>,
    %c15_i32_47 = arith.constant 15 : i32
    %74 = tpu.dynamic_rotate %63 by %c15_i32_47 dim 1 : vector<4x512xf32>, i32 -> vector<4x512xf32>
    %c2_48 = arith.constant 2 : index
    %c0_49 = arith.constant 0 : index
    %75 = vector.load %arg2[%c2_48, %c0_49] : memref<9x512xf32, #tpu.memory_space<vmem>>, vector<1x512xf32>
    %76 = vector.broadcast %75 : vector<1x512xf32> to vector<4x512xf32>
    %77 = arith.mulf %74, %76 : vector<4x512xf32>
    %c8_50 = arith.constant 8 : index
    %c0_51 = arith.constant 0 : index
    %78 = vector.load %arg11[%c8_50, %c0_51] : memref<36x512xf32, #tpu.memory_space<vmem>>, vector<4x512xf32>
    tpu.vector_store %arg11[%c8_50, %c0_51], %77 {strides = array<i32>} : memref<36x512xf32, #tpu.memory_space<vmem>>, vector<4x512xf32>,
    %c1_i32_52 = arith.constant 1 : i32
    %79 = tpu.dynamic_rotate %63 by %c1_i32_52 dim 1 : vector<4x512xf32>, i32 -> vector<4x512xf32>
    %c3_53 = arith.constant 3 : index
    %c0_54 = arith.constant 0 : index
    %80 = vector.load %arg2[%c3_53, %c0_54] : memref<9x512xf32, #tpu.memory_space<vmem>>, vector<1x512xf32>
    %81 = vector.broadcast %80 : vector<1x512xf32> to vector<4x512xf32>
    %82 = arith.mulf %79, %81 : vector<4x512xf32>
    %c12_55 = arith.constant 12 : index
    %c0_56 = arith.constant 0 : index
    %83 = vector.load %arg11[%c12_55, %c0_56] : memref<36x512xf32, #tpu.memory_space<vmem>>, vector<4x512xf32>
    tpu.vector_store %arg11[%c12_55, %c0_56], %82 {strides = array<i32>} : memref<36x512xf32, #tpu.memory_space<vmem>>, vector<4x512xf32>,
    %c4_57 = arith.constant 4 : index
    %c0_58 = arith.constant 0 : index
    %84 = vector.load %arg2[%c4_57, %c0_58] : memref<9x512xf32, #tpu.memory_space<vmem>>, vector<1x512xf32>
    %85 = vector.broadcast %84 : vector<1x512xf32> to vector<4x512xf32>
    %86 = arith.mulf %63, %85 : vector<4x512xf32>
    %c16_59 = arith.constant 16 : index
    %c0_60 = arith.constant 0 : index
    %87 = vector.load %arg11[%c16_59, %c0_60] : memref<36x512xf32, #tpu.memory_space<vmem>>, vector<4x512xf32>
    tpu.vector_store %arg11[%c16_59, %c0_60], %86 {strides = array<i32>} : memref<36x512xf32, #tpu.memory_space<vmem>>, vector<4x512xf32>,
    %c511_i32_61 = arith.constant 511 : i32
    %88 = tpu.dynamic_rotate %63 by %c511_i32_61 dim 1 : vector<4x512xf32>, i32 -> vector<4x512xf32>
    %c5_62 = arith.constant 5 : index
    %c0_63 = arith.constant 0 : index
    %89 = vector.load %arg2[%c5_62, %c0_63] : memref<9x512xf32, #tpu.memory_space<vmem>>, vector<1x512xf32>
    %90 = vector.broadcast %89 : vector<1x512xf32> to vector<4x512xf32>
    %91 = arith.mulf %88, %90 : vector<4x512xf32>
    %c20_64 = arith.constant 20 : index
    %c0_65 = arith.constant 0 : index
    %92 = vector.load %arg11[%c20_64, %c0_65] : memref<36x512xf32, #tpu.memory_space<vmem>>, vector<4x512xf32>
    tpu.vector_store %arg11[%c20_64, %c0_65], %91 {strides = array<i32>} : memref<36x512xf32, #tpu.memory_space<vmem>>, vector<4x512xf32>,
    %c497_i32_66 = arith.constant 497 : i32
    %93 = tpu.dynamic_rotate %63 by %c497_i32_66 dim 1 : vector<4x512xf32>, i32 -> vector<4x512xf32>
    %c6_67 = arith.constant 6 : index
    %c0_68 = arith.constant 0 : index
    %94 = vector.load %arg2[%c6_67, %c0_68] : memref<9x512xf32, #tpu.memory_space<vmem>>, vector<1x512xf32>
    %95 = vector.broadcast %94 : vector<1x512xf32> to vector<4x512xf32>
    %96 = arith.mulf %93, %95 : vector<4x512xf32>
    %c24_69 = arith.constant 24 : index
    %c0_70 = arith.constant 0 : index
    %97 = vector.load %arg11[%c24_69, %c0_70] : memref<36x512xf32, #tpu.memory_space<vmem>>, vector<4x512xf32>
    tpu.vector_store %arg11[%c24_69, %c0_70], %96 {strides = array<i32>} : memref<36x512xf32, #tpu.memory_space<vmem>>, vector<4x512xf32>,
    %c496_i32_71 = arith.constant 496 : i32
    %98 = tpu.dynamic_rotate %63 by %c496_i32_71 dim 1 : vector<4x512xf32>, i32 -> vector<4x512xf32>
    %c7_72 = arith.constant 7 : index
    %c0_73 = arith.constant 0 : index
    %99 = vector.load %arg2[%c7_72, %c0_73] : memref<9x512xf32, #tpu.memory_space<vmem>>, vector<1x512xf32>
    %100 = vector.broadcast %99 : vector<1x512xf32> to vector<4x512xf32>
    %101 = arith.mulf %98, %100 : vector<4x512xf32>
    %c28_74 = arith.constant 28 : index
    %c0_75 = arith.constant 0 : index
    %102 = vector.load %arg11[%c28_74, %c0_75] : memref<36x512xf32, #tpu.memory_space<vmem>>, vector<4x512xf32>
    tpu.vector_store %arg11[%c28_74, %c0_75], %101 {strides = array<i32>} : memref<36x512xf32, #tpu.memory_space<vmem>>, vector<4x512xf32>,
    %c495_i32_76 = arith.constant 495 : i32
    %103 = tpu.dynamic_rotate %63 by %c495_i32_76 dim 1 : vector<4x512xf32>, i32 -> vector<4x512xf32>
    %c8_77 = arith.constant 8 : index
    %c0_78 = arith.constant 0 : index
    %104 = vector.load %arg2[%c8_77, %c0_78] : memref<9x512xf32, #tpu.memory_space<vmem>>, vector<1x512xf32>
    %105 = vector.broadcast %104 : vector<1x512xf32> to vector<4x512xf32>
    %106 = arith.mulf %103, %105 : vector<4x512xf32>
    %c32_79 = arith.constant 32 : index
    %c0_80 = arith.constant 0 : index
    %107 = vector.load %arg11[%c32_79, %c0_80] : memref<36x512xf32, #tpu.memory_space<vmem>>, vector<4x512xf32>
    tpu.vector_store %arg11[%c32_79, %c0_80], %106 {strides = array<i32>} : memref<36x512xf32, #tpu.memory_space<vmem>>, vector<4x512xf32>,
    %c0_81 = arith.constant 0 : index
    %c0_82 = arith.constant 0 : index
    %108 = vector.load %arg8[%c0_81, %c0_82] : memref<4x36xf32, #tpu.memory_space<vmem>>, vector<4x36xf32>
    %c0_83 = arith.constant 0 : index
    %c0_84 = arith.constant 0 : index
    %109 = vector.load %arg11[%c0_83, %c0_84] : memref<36x512xf32, #tpu.memory_space<vmem>>, vector<36x512xf32>
    %cst_85 = arith.constant dense<0.000000e+00> : vector<4x512xf32>
    %110 = tpu.matmul %108, %109, %cst_85 {dimension_numbers = #tpu.dot_dimension_numbers<[1], [0], [0], [1], [0, 0, 1, 1], [], []>} : vector<4x36xf32>, vector<36x512xf32>, vector<4x512xf32> -> vector<4x512xf32>
    %c0_86 = arith.constant 0 : index
    %c0_87 = arith.constant 0 : index
    %111 = vector.load %arg9[%c0_86, %c0_87] : memref<4x1xf32, #tpu.memory_space<vmem>>, vector<4x1xf32>
    %112 = vector.broadcast %111 : vector<4x1xf32> to vector<4x512xf32>
    %113 = arith.addf %110, %112 : vector<4x512xf32>
    %114 = arith.addf %113, %0 : vector<4x512xf32>
    %c0_88 = arith.constant 0 : index
    %c0_89 = arith.constant 0 : index
    %115 = vector.load %arg10[%c0_88, %c0_89] : memref<4x512xf32, #tpu.memory_space<vmem>>, vector<4x512xf32>
    tpu.vector_store %arg10[%c0_88, %c0_89], %114 {strides = array<i32>} : memref<4x512xf32, #tpu.memory_space<vmem>>, vector<4x512xf32>,
    return
  }
  func.func @transform_0(%arg0: i32) -> (i32, i32) {
    %c0_i32 = arith.constant 0 : i32
    %c0_i32_0 = arith.constant 0 : i32
    return %c0_i32, %arg0 : i32, i32
  }
  func.func @transform_1(%arg0: i32) -> (i32, i32) {
    %c0_i32 = arith.constant 0 : i32
    %c0_i32_0 = arith.constant 0 : i32
    %c0_i32_1 = arith.constant 0 : i32
    return %c0_i32, %c0_i32_0 : i32, i32
  }
  func.func @transform_2(%arg0: i32) -> (i32, i32) {
    %c0_i32 = arith.constant 0 : i32
    %c0_i32_0 = arith.constant 0 : i32
    %c0_i32_1 = arith.constant 0 : i32
    return %c0_i32, %c0_i32_0 : i32, i32
  }
  func.func @transform_3(%arg0: i32) -> (i32, i32) {
    %c0_i32 = arith.constant 0 : i32
    %c0_i32_0 = arith.constant 0 : i32
    %c0_i32_1 = arith.constant 0 : i32
    return %c0_i32, %c0_i32_0 : i32, i32
  }
  func.func @transform_4(%arg0: i32) -> (i32, i32) {
    %c0_i32 = arith.constant 0 : i32
    %c0_i32_0 = arith.constant 0 : i32
    %c0_i32_1 = arith.constant 0 : i32
    return %c0_i32, %c0_i32_0 : i32, i32
  }
  func.func @transform_5(%arg0: i32) -> (i32, i32) {
    %c0_i32 = arith.constant 0 : i32
    %c0_i32_0 = arith.constant 0 : i32
    %c0_i32_1 = arith.constant 0 : i32
    return %c0_i32, %c0_i32_0 : i32, i32
  }
  func.func @transform_6(%arg0: i32) -> (i32, i32) {
    %c0_i32 = arith.constant 0 : i32
    %c0_i32_0 = arith.constant 0 : i32
    %c0_i32_1 = arith.constant 0 : i32
    return %c0_i32, %c0_i32_0 : i32, i32
  }
  func.func @transform_7(%arg0: i32) -> (i32, i32) {
    %c0_i32 = arith.constant 0 : i32
    %c0_i32_0 = arith.constant 0 : i32
    %c0_i32_1 = arith.constant 0 : i32
    return %c0_i32, %c0_i32_0 : i32, i32
  }
  func.func @transform_8(%arg0: i32) -> (i32, i32) {
    %c0_i32 = arith.constant 0 : i32
    %c0_i32_0 = arith.constant 0 : i32
    %c0_i32_1 = arith.constant 0 : i32
    return %c0_i32, %c0_i32_0 : i32, i32
  }
  func.func @transform_9(%arg0: i32) -> (i32, i32) {
    %c0_i32 = arith.constant 0 : i32
    %c0_i32_0 = arith.constant 0 : i32
    return %c0_i32, %arg0 : i32, i32
  }
}

</mosaic_0001>

<llo_original>
// kernel: tpu_custom_call.1
$region0: #{tpu_custom_call.1}
  #allocation0 [shape = 'u32[]', space=smem, size = 0x4, offset = 0x4, fixed_abs, tag = 'smem constant byte address 0x4 - core index']
  #allocation1 [shape = 'u32[144,128]{1,0:T(1,128)}', space=vmem, size = 0x12000, scoped, tag = 'internal scratch']
  #allocation2 [shape = 'f32[36,512]{1,0:T(8,128)}', space=vmem, size = 0x14000, scoped, tag = 'scratch operand']
  %s0 = inlined_call_operand.vmem [shape: f32[4,512], index: 0, kind: input, shape index: {}]
  %s1 = inlined_call_operand.hbm [shape: f32[9,512], index: 1, kind: input, shape index: {}]
  %s2 = inlined_call_operand.vmem [shape: f32[4,1], index: 2, kind: input, shape index: {}]
  %s3 = inlined_call_operand.vmem [shape: f32[4,1], index: 3, kind: input, shape index: {}]
  %s4 = inlined_call_operand.vmem [shape: f32[4,36], index: 4, kind: input, shape index: {}]
  %s5 = inlined_call_operand.vmem [shape: f32[4,1], index: 5, kind: input, shape index: {}]
  %s6 = inlined_call_operand.vmem [shape: f32[4,1], index: 6, kind: input, shape index: {}]
  %s7 = inlined_call_operand.vmem [shape: f32[4,36], index: 7, kind: input, shape index: {}]
  %s8 = inlined_call_operand.vmem [shape: f32[4,1], index: 8, kind: input, shape index: {}]
  %s9 = inlined_call_operand.hbm [shape: f32[4,512], index: 9, kind: output, shape index: {}]
  %s10 = sld [smem:[#allocation0]]
  $region50: #{tpu_custom_call.1} parent=0
    _
  %s12 = ssub.s32 1, %s10
  %s13 = scalar_select 0, %s12, %s10
  $region1: #{tpu_custom_call.1} parent=0
    #allocation3 [shape = 'u8[32768]{0}', space=vmem, size = 0x8000, scoped, tag = 'input window, operand 1, single buffered']
    #allocation4 [shape = 's32[1]{0}', space=sflag, size = 0x4, scoped, tag = 'scoped memory for tpu_custom_call.1']
    #allocation5 [shape = 's32[1]{0}', space=sflag, size = 0x4, scoped, tag = 'scoped memory for tpu_custom_call.1']
    #allocation6 [shape = 'u8[8192]{0}', space=vmem, size = 0x2000, scoped, tag = 'output window, operand 0, single buffered']
    %14 = vsyncpa [#allocation4], 0
    %15 = vsyncpa [#allocation5], 0
    // Predicated region
    $region2: #{tpu_custom_call.1} parent=1 // pred_check
      _
    $region3: #{tpu_custom_call.1} parent=1 // pred_check_branch
      %17 = sbr.rel (0) target = $region5
    $region4: #{tpu_custom_call.1} parent=1 // pred_region
      _
    $region5: #{tpu_custom_call.1} parent=1 // pred_fallthru
      _
    // Predicated region
    $region6: #{tpu_custom_call.1} parent=1 // pred_check
      _
    $region7: #{tpu_custom_call.1} parent=1 // pred_check_branch
      %19 = sbr.rel (0) target = $region9
    $region8: #{tpu_custom_call.1} parent=1 // pred_region
      %s21 = ssub.s32 1024, 1024
      %22 = vsyncadd [#allocation4], %s21
      %s23 = sshll.u32 [#allocation3], 4
      %s24 = int_to_ptr.vmem [resolvable:$true] %s23
      %29 = dma.hbm_to_vmem [thread:$0]  %s1, 1024, %s24, [#allocation4], 512, 512, 32
    $region9: #{tpu_custom_call.1} parent=1 // pred_fallthru
      _
    // Predicated region
    $region10: #{tpu_custom_call.1} parent=1 // pred_check
      _
    $region11: #{tpu_custom_call.1} parent=1 // pred_check_branch
      %31 = sbr.rel (0) target = $region13
    $region12: #{tpu_custom_call.1} parent=1 // pred_region
      _
    $region13: #{tpu_custom_call.1} parent=1 // pred_fallthru
      _
    // Predicated region
    $region14: #{tpu_custom_call.1} parent=1 // pred_check
      _
    $region15: #{tpu_custom_call.1} parent=1 // pred_check_branch
      %33 = sbr.rel (0) target = $region17
    $region16: #{tpu_custom_call.1} parent=1 // pred_region
      _
    $region17: #{tpu_custom_call.1} parent=1 // pred_fallthru
      _
    // Predicated region
    $region18: #{tpu_custom_call.1} parent=1 // pred_check
      _
    $region19: #{tpu_custom_call.1} parent=1 // pred_check_branch
      %35 = sbr.rel (0) target = $region21
    $region20: #{tpu_custom_call.1} parent=1 // pred_region
      _
    $region21: #{tpu_custom_call.1} parent=1 // pred_fallthru
      _
    // Predicated region
    $region22: #{tpu_custom_call.1} parent=1 // pred_check
      _
    $region23: #{tpu_custom_call.1} parent=1 // pred_check_branch
      %37 = sbr.rel (0) target = $region25
    $region24: #{tpu_custom_call.1} parent=1 // pred_region
      _
    $region25: #{tpu_custom_call.1} parent=1 // pred_fallthru
      _
    // Predicated region
    $region26: #{tpu_custom_call.1} parent=1 // pred_check
      _
    $region27: #{tpu_custom_call.1} parent=1 // pred_check_branch
      %39 = sbr.rel (0) target = $region29
    $region28: #{tpu_custom_call.1} parent=1 // pred_region
      _
    $region29: #{tpu_custom_call.1} parent=1 // pred_fallthru
      _
    // Predicated region
    $region30: #{tpu_custom_call.1} parent=1 // pred_check
      _
    $region31: #{tpu_custom_call.1} parent=1 // pred_check_branch
      %41 = sbr.rel (0) target = $region33
    $region32: #{tpu_custom_call.1} parent=1 // pred_region
      _
    $region33: #{tpu_custom_call.1} parent=1 // pred_fallthru
      _
    // Predicated region
    $region34: #{tpu_custom_call.1} parent=1 // pred_check
      _
    $region35: #{tpu_custom_call.1} parent=1 // pred_check_branch
      %43 = sbr.rel (0) target = $region37
    $region36: #{tpu_custom_call.1} parent=1 // pred_region
      _
    $region37: #{tpu_custom_call.1} parent=1 // pred_fallthru
      _
    // Predicated region
    $region38: #{tpu_custom_call.1} parent=1 // pred_check
      _
    $region39: #{tpu_custom_call.1} parent=1 // pred_check_branch
      %45 = sbr.rel (0) target = $region41
    $region40: #{tpu_custom_call.1} parent=1 // pred_region
      %46 = dma.done [#allocation4], 1024
    $region41: #{tpu_custom_call.1} parent=1 // pred_fallthru
      _
    %v47 = vld [vmem:[%s0] sm:$0xff]
    %v48 = vld [vmem:[%s0 + $0x8] sm:$0xff]
    %v49 = vld [vmem:[%s2] sm:$0xf]
    %51 = vset.pattern.permute.xlu0 0
    %52 = vperm.xlu0 %51, %v49
    %v53 = vpop.permute.xlu0 %52
    %v55 = vunpack.c.l.s4 839922192
    %v56 = vunpack.c.0.s8 %v55
    %v57 = vlaneseq
    %v58 = vshrl.u32 %v57, 7
    %v59 = vsub.s32 %v56, %v58
    %v60 = vrot.slane %v53, %v59
    %v62 = vmul.f32 %v47, %v60
    %v63 = vmul.f32 %v48, %v60
    %v64 = vld [vmem:[%s3] sm:$0xf]
    %66 = vset.pattern.permute.xlu0 0
    %67 = vperm.xlu0 %66, %v64
    %v68 = vpop.permute.xlu0 %67
    %v70 = vunpack.c.l.s4 839922192
    %v71 = vunpack.c.0.s8 %v70
    %v72 = vlaneseq
    %v73 = vshrl.u32 %v72, 7
    %v74 = vsub.s32 %v71, %v73
    %v75 = vrot.slane %v68, %v74
    %v77 = vadd.f32 %v62, %v75
    %v78 = vadd.f32 %v63, %v75
    %v79 = vmax.f32 %v77, 0.0
    %v80 = vmax.f32 %v78, 0.0
    %v83 = vcombine.high %v79, %v79
    %v84 = vcombine.high %v80, %v80
    %87 = vrot.lane.b32.xlu0 %v79, 17
    %v88 = vpop.permute.xlu0 %87
    %89 = vrot.lane.b32.xlu0 %v83, 17
    %v90 = vpop.permute.xlu0 %89
    %91 = vrot.lane.b32.xlu0 %v80, 17
    %v92 = vpop.permute.xlu0 %91
    %93 = vrot.lane.b32.xlu0 %v84, 17
    %v94 = vpop.permute.xlu0 %93
    %v95 = vlaneseq
    %v96 = vand.u32 %v95, 127
    %vm97 = vcmp.lt.s32.totalorder %v96, 17
    %v98 = vsel %vm97, %v92, %v94
    %v99 = vsel %vm97, %v90, %v92
    %v100 = vsel %vm97, %v88, %v90
    %v101 = vsel %vm97, %v94, %v88
    %v102 = vld [vmem:[#allocation3] ss:$8 sm:$0xf]
    %v104 = vlaneseq
    %v105 = vshrl.u32 %v104, 7
    %v106 = vsub.s32 0, %v105
    %v107 = vrot.slane %v102, %v106
    %v108 = vlaneseq
    %v109 = vshrl.u32 %v108, 7
    %v110 = vsub.s32 1, %v109
    %v111 = vrot.slane %v102, %v110
    %v112 = vlaneseq
    %v113 = vshrl.u32 %v112, 7
    %v114 = vsub.s32 2, %v113
    %v115 = vrot.slane %v102, %v114
    %v116 = vlaneseq
    %v117 = vshrl.u32 %v116, 7
    %v118 = vsub.s32 3, %v117
    %v119 = vrot.slane %v102, %v118
    %v124 = vmul.f32 %v101, %v107
    %v125 = vmul.f32 %v100, %v111
    %v126 = vmul.f32 %v99, %v115
    %v127 = vmul.f32 %v98, %v119
    %128 = vst [vmem:[#allocation2] sm:$0xf] %v124
    %129 = vst [vmem:[#allocation2 + $0x8] sm:$0xf] %v125
    %130 = vst [vmem:[#allocation2 + $0x10] sm:$0xf] %v126
    %131 = vst [vmem:[#allocation2 + $0x18] sm:$0xf] %v127
    %132 = vrot.lane.b32.xlu0 %v79, 16
    %v133 = vpop.permute.xlu0 %132
    %134 = vrot.lane.b32.xlu0 %v83, 16
    %v135 = vpop.permute.xlu0 %134
    %136 = vrot.lane.b32.xlu0 %v80, 16
    %v137 = vpop.permute.xlu0 %136
    %138 = vrot.lane.b32.xlu0 %v84, 16
    %v139 = vpop.permute.xlu0 %138
    %vm140 = vcmp.lt.s32.totalorder %v96, 16
    %v141 = vsel %vm140, %v137, %v139
    %v142 = vsel %vm140, %v135, %v137
    %v143 = vsel %vm140, %v133, %v135
    %v144 = vsel %vm140, %v139, %v133
    %s145 = scalar_lea.vmem [#allocation3], 1
    %v146 = vld [vmem:[%s145] ss:$8 sm:$0xf]
    %v148 = vlaneseq
    %v149 = vshrl.u32 %v148, 7
    %v150 = vsub.s32 0, %v149
    %v151 = vrot.slane %v146, %v150
    %v152 = vlaneseq
    %v153 = vshrl.u32 %v152, 7
    %v154 = vsub.s32 1, %v153
    %v155 = vrot.slane %v146, %v154
    %v156 = vlaneseq
    %v157 = vshrl.u32 %v156, 7
    %v158 = vsub.s32 2, %v157
    %v159 = vrot.slane %v146, %v158
    %v160 = vlaneseq
    %v161 = vshrl.u32 %v160, 7
    %v162 = vsub.s32 3, %v161
    %v163 = vrot.slane %v146, %v162
    %v168 = vmul.f32 %v144, %v151
    %v169 = vmul.f32 %v143, %v155
    %v170 = vmul.f32 %v142, %v159
    %v171 = vmul.f32 %v141, %v163
    %v176 = vrot.slane %v168, 4
    %v177 = vrot.slane %v169, 4
    %v178 = vrot.slane %v170, 4
    %v179 = vrot.slane %v171, 4
    %184 = vst [vmem:[#allocation2] sm:$0xf0] %v176
    %185 = vst [vmem:[#allocation2 + $0x8] sm:$0xf0] %v177
    %186 = vst [vmem:[#allocation2 + $0x10] sm:$0xf0] %v178
    %187 = vst [vmem:[#allocation2 + $0x18] sm:$0xf0] %v179
    %188 = vrot.lane.b32.xlu0 %v79, 15
    %v189 = vpop.permute.xlu0 %188
    %190 = vrot.lane.b32.xlu0 %v83, 15
    %v191 = vpop.permute.xlu0 %190
    %192 = vrot.lane.b32.xlu0 %v80, 15
    %v193 = vpop.permute.xlu0 %192
    %194 = vrot.lane.b32.xlu0 %v84, 15
    %v195 = vpop.permute.xlu0 %194
    %vm196 = vcmp.lt.s32.totalorder %v96, 15
    %v197 = vsel %vm196, %v193, %v195
    %v198 = vsel %vm196, %v191, %v193
    %v199 = vsel %vm196, %v189, %v191
    %v200 = vsel %vm196, %v195, %v189
    %s201 = scalar_lea.vmem [#allocation3], 2
    %v202 = vld [vmem:[%s201] ss:$8 sm:$0xf]
    %v204 = vlaneseq
    %v205 = vshrl.u32 %v204, 7
    %v206 = vsub.s32 0, %v205
    %v207 = vrot.slane %v202, %v206
    %v208 = vlaneseq
    %v209 = vshrl.u32 %v208, 7
    %v210 = vsub.s32 1, %v209
    %v211 = vrot.slane %v202, %v210
    %v212 = vlaneseq
    %v213 = vshrl.u32 %v212, 7
    %v214 = vsub.s32 2, %v213
    %v215 = vrot.slane %v202, %v214
    %v216 = vlaneseq
    %v217 = vshrl.u32 %v216, 7
    %v218 = vsub.s32 3, %v217
    %v219 = vrot.slane %v202, %v218
    %v224 = vmul.f32 %v200, %v207
    %v225 = vmul.f32 %v199, %v211
    %v226 = vmul.f32 %v198, %v215
    %v227 = vmul.f32 %v197, %v219
    %228 = vst [vmem:[#allocation2 + $0x20] sm:$0xf] %v224
    %229 = vst [vmem:[#allocation2 + $0x28] sm:$0xf] %v225
    %230 = vst [vmem:[#allocation2 + $0x30] sm:$0xf] %v226
    %231 = vst [vmem:[#allocation2 + $0x38] sm:$0xf] %v227
    %232 = vrot.lane.b32.xlu0 %v79, 1
    %v233 = vpop.permute.xlu0 %232
    %234 = vrot.lane.b32.xlu0 %v83, 1
    %v235 = vpop.permute.xlu0 %234
    %236 = vrot.lane.b32.xlu0 %v80, 1
    %v237 = vpop.permute.xlu0 %236
    %238 = vrot.lane.b32.xlu0 %v84, 1
    %v239 = vpop.permute.xlu0 %238
    %vm240 = vcmp.lt.s32.totalorder %v96, 1
    %v241 = vsel %vm240, %v237, %v239
    %v242 = vsel %vm240, %v235, %v237
    %v243 = vsel %vm240, %v233, %v235
    %v244 = vsel %vm240, %v239, %v233
    %s245 = scalar_lea.vmem [#allocation3], 3
    %v246 = vld [vmem:[%s245] ss:$8 sm:$0xf]
    %v248 = vlaneseq
    %v249 = vshrl.u32 %v248, 7
    %v250 = vsub.s32 0, %v249
    %v251 = vrot.slane %v246, %v250
    %v252 = vlaneseq
    %v253 = vshrl.u32 %v252, 7
    %v254 = vsub.s32 1, %v253
    %v255 = vrot.slane %v246, %v254
    %v256 = vlaneseq
    %v257 = vshrl.u32 %v256, 7
    %v258 = vsub.s32 2, %v257
    %v259 = vrot.slane %v246, %v258
    %v260 = vlaneseq
    %v261 = vshrl.u32 %v260, 7
    %v262 = vsub.s32 3, %v261
    %v263 = vrot.slane %v246, %v262
    %v268 = vmul.f32 %v244, %v251
    %v269 = vmul.f32 %v243, %v255
    %v270 = vmul.f32 %v242, %v259
    %v271 = vmul.f32 %v241, %v263
    %v276 = vrot.slane %v268, 4
    %v277 = vrot.slane %v269, 4
    %v278 = vrot.slane %v270, 4
    %v279 = vrot.slane %v271, 4
    %284 = vst [vmem:[#allocation2 + $0x20] sm:$0xf0] %v276
    %285 = vst [vmem:[#allocation2 + $0x28] sm:$0xf0] %v277
    %286 = vst [vmem:[#allocation2 + $0x30] sm:$0xf0] %v278
    %287 = vst [vmem:[#allocation2 + $0x38] sm:$0xf0] %v279
    %s288 = scalar_lea.vmem [#allocation3], 4
    %v289 = vld [vmem:[%s288] ss:$8 sm:$0xf]
    %v291 = vlaneseq
    %v292 = vshrl.u32 %v291, 7
    %v293 = vsub.s32 0, %v292
    %v294 = vrot.slane %v289, %v293
    %v295 = vlaneseq
    %v296 = vshrl.u32 %v295, 7
    %v297 = vsub.s32 1, %v296
    %v298 = vrot.slane %v289, %v297
    %v299 = vlaneseq
    %v300 = vshrl.u32 %v299, 7
    %v301 = vsub.s32 2, %v300
    %v302 = vrot.slane %v289, %v301
    %v303 = vlaneseq
    %v304 = vshrl.u32 %v303, 7
    %v305 = vsub.s32 3, %v304
    %v306 = vrot.slane %v289, %v305
    %v307 = vcombine.low %v294, %v298
    %v308 = vcombine.low %v302, %v306
    %v311 = vmul.f32 %v79, %v307
    %v312 = vmul.f32 %v80, %v308
    %v315 = vcombine.high %v311, %v311
    %v316 = vcombine.high %v312, %v312
    %319 = vst [vmem:[#allocation2 + $0x40] sm:$0xf] %v311
    %320 = vst [vmem:[#allocation2 + $0x48] sm:$0xf] %v315
    %321 = vst [vmem:[#allocation2 + $0x50] sm:$0xf] %v312
    %322 = vst [vmem:[#allocation2 + $0x58] sm:$0xf] %v316
    %323 = vrot.lane.b32.xlu0 %v79, 127
    %v324 = vpop.permute.xlu0 %323
    %325 = vrot.lane.b32.xlu0 %v83, 127
    %v326 = vpop.permute.xlu0 %325
    %327 = vrot.lane.b32.xlu0 %v80, 127
    %v328 = vpop.permute.xlu0 %327
    %329 = vrot.lane.b32.xlu0 %v84, 127
    %v330 = vpop.permute.xlu0 %329
    %vm331 = vcmp.lt.s32.totalorder %v96, 127
    %v332 = vsel %vm331, %v328, %v330
    %v333 = vsel %vm331, %v326, %v328
    %v334 = vsel %vm331, %v324, %v326
    %v335 = vsel %vm331, %v330, %v324
    %s336 = scalar_lea.vmem [#allocation3], 5
    %v337 = vld [vmem:[%s336] ss:$8 sm:$0xf]
    %v339 = vlaneseq
    %v340 = vshrl.u32 %v339, 7
    %v341 = vsub.s32 0, %v340
    %v342 = vrot.slane %v337, %v341
    %v343 = vlaneseq
    %v344 = vshrl.u32 %v343, 7
    %v345 = vsub.s32 1, %v344
    %v346 = vrot.slane %v337, %v345
    %v347 = vlaneseq
    %v348 = vshrl.u32 %v347, 7
    %v349 = vsub.s32 2, %v348
    %v350 = vrot.slane %v337, %v349
    %v351 = vlaneseq
    %v352 = vshrl.u32 %v351, 7
    %v353 = vsub.s32 3, %v352
    %v354 = vrot.slane %v337, %v353
    %v359 = vmul.f32 %v334, %v342
    %v360 = vmul.f32 %v333, %v346
    %v361 = vmul.f32 %v332, %v350
    %v362 = vmul.f32 %v335, %v354
    %v367 = vrot.slane %v359, 4
    %v368 = vrot.slane %v360, 4
    %v369 = vrot.slane %v361, 4
    %v370 = vrot.slane %v362, 4
    %375 = vst [vmem:[#allocation2 + $0x40] sm:$0xf0] %v367
    %376 = vst [vmem:[#allocation2 + $0x48] sm:$0xf0] %v368
    %377 = vst [vmem:[#allocation2 + $0x50] sm:$0xf0] %v369
    %378 = vst [vmem:[#allocation2 + $0x58] sm:$0xf0] %v370
    %379 = vrot.lane.b32.xlu0 %v79, 113
    %v380 = vpop.permute.xlu0 %379
    %381 = vrot.lane.b32.xlu0 %v83, 113
    %v382 = vpop.permute.xlu0 %381
    %383 = vrot.lane.b32.xlu0 %v80, 113
    %v384 = vpop.permute.xlu0 %383
    %385 = vrot.lane.b32.xlu0 %v84, 113
    %v386 = vpop.permute.xlu0 %385
    %vm387 = vcmp.lt.s32.totalorder %v96, 113
    %v388 = vsel %vm387, %v384, %v386
    %v389 = vsel %vm387, %v382, %v384
    %v390 = vsel %vm387, %v380, %v382
    %v391 = vsel %vm387, %v386, %v380
    %s392 = scalar_lea.vmem [#allocation3], 6
    %v393 = vld [vmem:[%s392] ss:$8 sm:$0xf]
    %v395 = vlaneseq
    %v396 = vshrl.u32 %v395, 7
    %v397 = vsub.s32 0, %v396
    %v398 = vrot.slane %v393, %v397
    %v399 = vlaneseq
    %v400 = vshrl.u32 %v399, 7
    %v401 = vsub.s32 1, %v400
    %v402 = vrot.slane %v393, %v401
    %v403 = vlaneseq
    %v404 = vshrl.u32 %v403, 7
    %v405 = vsub.s32 2, %v404
    %v406 = vrot.slane %v393, %v405
    %v407 = vlaneseq
    %v408 = vshrl.u32 %v407, 7
    %v409 = vsub.s32 3, %v408
    %v410 = vrot.slane %v393, %v409
    %v415 = vmul.f32 %v390, %v398
    %v416 = vmul.f32 %v389, %v402
    %v417 = vmul.f32 %v388, %v406
    %v418 = vmul.f32 %v391, %v410
    %419 = vst [vmem:[#allocation2 + $0x60] sm:$0xf] %v415
    %420 = vst [vmem:[#allocation2 + $0x68] sm:$0xf] %v416
    %421 = vst [vmem:[#allocation2 + $0x70] sm:$0xf] %v417
    %422 = vst [vmem:[#allocation2 + $0x78] sm:$0xf] %v418
    %423 = vrot.lane.b32.xlu0 %v79, 112
    %v424 = vpop.permute.xlu0 %423
    %425 = vrot.lane.b32.xlu0 %v83, 112
    %v426 = vpop.permute.xlu0 %425
    %427 = vrot.lane.b32.xlu0 %v80, 112
    %v428 = vpop.permute.xlu0 %427
    %429 = vrot.lane.b32.xlu0 %v84, 112
    %v430 = vpop.permute.xlu0 %429
    %vm431 = vcmp.lt.s32.totalorder %v96, 112
    %v432 = vsel %vm431, %v428, %v430
    %v433 = vsel %vm431, %v426, %v428
    %v434 = vsel %vm431, %v424, %v426
    %v435 = vsel %vm431, %v430, %v424
    %s436 = scalar_lea.vmem [#allocation3], 7
    %v437 = vld [vmem:[%s436] ss:$8 sm:$0xf]
    %v439 = vlaneseq
    %v440 = vshrl.u32 %v439, 7
    %v441 = vsub.s32 0, %v440
    %v442 = vrot.slane %v437, %v441
    %v443 = vlaneseq
    %v444 = vshrl.u32 %v443, 7
    %v445 = vsub.s32 1, %v444
    %v446 = vrot.slane %v437, %v445
    %v447 = vlaneseq
    %v448 = vshrl.u32 %v447, 7
    %v449 = vsub.s32 2, %v448
    %v450 = vrot.slane %v437, %v449
    %v451 = vlaneseq
    %v452 = vshrl.u32 %v451, 7
    %v453 = vsub.s32 3, %v452
    %v454 = vrot.slane %v437, %v453
    %v459 = vmul.f32 %v434, %v442
    %v460 = vmul.f32 %v433, %v446
    %v461 = vmul.f32 %v432, %v450
    %v462 = vmul.f32 %v435, %v454
    %v467 = vrot.slane %v459, 4
    %v468 = vrot.slane %v460, 4
    %v469 = vrot.slane %v461, 4
    %v470 = vrot.slane %v462, 4
    %475 = vst [vmem:[#allocation2 + $0x60] sm:$0xf0] %v467
    %476 = vst [vmem:[#allocation2 + $0x68] sm:$0xf0] %v468
    %477 = vst [vmem:[#allocation2 + $0x70] sm:$0xf0] %v469
    %478 = vst [vmem:[#allocation2 + $0x78] sm:$0xf0] %v470
    %479 = vrot.lane.b32.xlu0 %v79, 111
    %v480 = vpop.permute.xlu0 %479
    %481 = vrot.lane.b32.xlu0 %v83, 111
    %v482 = vpop.permute.xlu0 %481
    %483 = vrot.lane.b32.xlu0 %v80, 111
    %v484 = vpop.permute.xlu0 %483
    %485 = vrot.lane.b32.xlu0 %v84, 111
    %v486 = vpop.permute.xlu0 %485
    %vm487 = vcmp.lt.s32.totalorder %v96, 111
    %v488 = vsel %vm487, %v484, %v486
    %v489 = vsel %vm487, %v482, %v484
    %v490 = vsel %vm487, %v480, %v482
    %v491 = vsel %vm487, %v486, %v480
    %s492 = scalar_lea.vmem [#allocation3], 32
    %v493 = vld [vmem:[%s492] ss:$8 sm:$0xf]
    %v495 = vlaneseq
    %v496 = vshrl.u32 %v495, 7
    %v497 = vsub.s32 0, %v496
    %v498 = vrot.slane %v493, %v497
    %v499 = vlaneseq
    %v500 = vshrl.u32 %v499, 7
    %v501 = vsub.s32 1, %v500
    %v502 = vrot.slane %v493, %v501
    %v503 = vlaneseq
    %v504 = vshrl.u32 %v503, 7
    %v505 = vsub.s32 2, %v504
    %v506 = vrot.slane %v493, %v505
    %v507 = vlaneseq
    %v508 = vshrl.u32 %v507, 7
    %v509 = vsub.s32 3, %v508
    %v510 = vrot.slane %v493, %v509
    %v515 = vmul.f32 %v490, %v498
    %v516 = vmul.f32 %v489, %v502
    %v517 = vmul.f32 %v488, %v506
    %v518 = vmul.f32 %v491, %v510
    %519 = vst [vmem:[#allocation2 + $0x80] sm:$0xf] %v515
    %520 = vst [vmem:[#allocation2 + $0x88] sm:$0xf] %v516
    %521 = vst [vmem:[#allocation2 + $0x90] sm:$0xf] %v517
    %522 = vst [vmem:[#allocation2 + $0x98] sm:$0xf] %v518
    %v523 = vld [vmem:[%s4] sm:$0xf]
    %v524 = vld [vmem:[#allocation2] sm:$0xff]
    %v525 = vld [vmem:[#allocation2 + $0x8] sm:$0xff]
    %v526 = vld [vmem:[#allocation2 + $0x10] sm:$0xff]
    %v527 = vld [vmem:[#allocation2 + $0x18] sm:$0xff]
    %v528 = vld [vmem:[#allocation2 + $0x20] sm:$0xff]
    %v529 = vld [vmem:[#allocation2 + $0x28] sm:$0xff]
    %v530 = vld [vmem:[#allocation2 + $0x30] sm:$0xff]
    %v531 = vld [vmem:[#allocation2 + $0x38] sm:$0xff]
    %v532 = vld [vmem:[#allocation2 + $0x40] sm:$0xff]
    %v533 = vld [vmem:[#allocation2 + $0x48] sm:$0xff]
    %v534 = vld [vmem:[#allocation2 + $0x50] sm:$0xff]
    %v535 = vld [vmem:[#allocation2 + $0x58] sm:$0xff]
    %v536 = vld [vmem:[#allocation2 + $0x60] sm:$0xff]
    %v537 = vld [vmem:[#allocation2 + $0x68] sm:$0xff]
    %v538 = vld [vmem:[#allocation2 + $0x70] sm:$0xff]
    %v539 = vld [vmem:[#allocation2 + $0x78] sm:$0xff]
    %v540 = vld [vmem:[#allocation2 + $0x80] sm:$0xf]
    %v541 = vld [vmem:[#allocation2 + $0x88] sm:$0xf]
    %v542 = vld [vmem:[#allocation2 + $0x90] sm:$0xf]
    %v543 = vld [vmem:[#allocation2 + $0x98] sm:$0xf]
    %vm544 = vcmask 293888
    %v546 = vsel %vm544, %v523, 0
    %vm548 = vcmask 1043456
    %v550 = vsel %vm548, %v540, 0
    %v553 = vsel %vm548, %v541, 0
    %v556 = vsel %vm548, %v542, 0
    %v559 = vsel %vm548, %v543, 0
    %561 = vmatprep.subr.mxu0 %v525
    %562 = vmatpush1.msra.mxu0 %v524
    %563 = vmatprep.subr.mxu0 %v529
    %564 = vmatpush1.msra.mxu0 %v528
    %565 = vmatprep.subr.mxu0 %v533
    %566 = vmatpush1.msra.mxu0 %v532
    %567 = vmatprep.subr.mxu0 %v537
    %568 = vmatpush1.msra.mxu0 %v536
    %569 = vmatprep.subr.mxu0 %v553
    %570 = vmatpush1.msra.mxu0 %v550
    %571 = vmatprep.subr.mxu0 0.0
    %572 = vmatpush1.msra.mxu0 0.0
    %573 = vmatprep.subr.mxu0 0.0
    %574 = vmatpush1.msra.mxu0 0.0
    %575 = vmatprep.subr.mxu0 0.0
    %576 = vmatpush1.msra.mxu0 0.0
    %577 = vmatprep.subr.mxu0 0.0
    %578 = vmatpush1.msra.mxu0 0.0
    %579 = vmatprep.subr.mxu0 0.0
    %580 = vmatpush1.msra.mxu0 0.0
    %581 = vmatprep.subr.mxu0 0.0
    %582 = vmatpush1.msra.mxu0 0.0
    %583 = vmatprep.subr.mxu0 0.0
    %584 = vmatpush1.msra.mxu0 0.0
    %585 = vmatprep.subr.mxu0 0.0
    %586 = vmatpush1.msra.mxu0 0.0
    %587 = vmatprep.subr.mxu0 0.0
    %588 = vmatpush1.msra.mxu0 0.0
    %589 = vmatprep.subr.mxu0 0.0
    %590 = vmatpush1.msra.mxu0 0.0
    %591 = vmatprep.subr.mxu0 0.0
    %592 = vmatpush1.msra.mxu0 0.0
    %593 = vmatprep.subr.mxu0 0.0
    %594 = vmatpush1.msra.mxu0 0.0
    %595 = vmatprep.subr.mxu0 0.0
    %596 = vmatpush1.msra.mxu0 0.0
    %597 = vmatprep.subr.mxu0 0.0
    %598 = vmatpush1.msra.mxu0 0.0
    %599 = vmatprep.subr.mxu0 0.0
    %600 = vmatpush1.msra.mxu0 0.0
    %601 = vmatprep.subr.mxu0 0.0
    %602 = vmatpush1.msra.mxu0 0.0
    %603 = vmatprep.subr.mxu0 0.0
    %604 = vmatpush1.msra.mxu0 0.0
    %605 = vmatprep.subr.mxu0 0.0
    %606 = vmatpush1.msra.mxu0 0.0
    %607 = vmatprep.subr.mxu0 0.0
    %608 = vmatpush1.msra.mxu0 0.0
    %609 = vmatprep.subr.mxu0 0.0
    %610 = vmatpush1.msra.mxu0 0.0
    %611 = vmatprep.subr.mxu0 0.0
    %612 = vmatpush1.msra.mxu0 0.0
    %613 = vmatprep.subr.mxu0 0.0
    %614 = vmatpush1.msra.mxu0 0.0
    %615 = vmatprep.subr.mxu0 0.0
    %616 = vmatpush1.msra.mxu0 0.0
    %617 = vmatprep.subr.mxu0 0.0
    %618 = vmatpush1.msra.mxu0 0.0
    %619 = vmatprep.subr.mxu0 0.0
    %620 = vmatpush1.msra.mxu0 0.0
    %621 = vmatprep.subr.mxu0 0.0
    %622 = vmatpush1.msra.mxu0 0.0
    %623 = vmatprep.subr.mxu0 0.0
    %624 = vmatpush1.msra.mxu0 0.0
    %625 = vmatprep.mubr.f32.mxu0 0.0
    %626 = vmatmul.mubr.f32.gmra.mrb[0].mxu0 %v546
    %v627 = vpop.f32.mrb[0].mxu0
    %v628 = vadd.f32 0.0, %v627
    %v629 = vpop.f32.mrb[0].mxu0
    %v630 = vadd.f32 0.0, %v629
    %631 = vdwg.mxu0
    %632 = vmatprep.subr.mxu0 %v527
    %633 = vmatpush1.msra.mxu0 %v526
    %634 = vmatprep.subr.mxu0 %v531
    %635 = vmatpush1.msra.mxu0 %v530
    %636 = vmatprep.subr.mxu0 %v535
    %637 = vmatpush1.msra.mxu0 %v534
    %638 = vmatprep.subr.mxu0 %v539
    %639 = vmatpush1.msra.mxu0 %v538
    %640 = vmatprep.subr.mxu0 %v559
    %641 = vmatpush1.msra.mxu0 %v556
    %642 = vmatprep.subr.mxu0 0.0
    %643 = vmatpush1.msra.mxu0 0.0
    %644 = vmatprep.subr.mxu0 0.0
    %645 = vmatpush1.msra.mxu0 0.0
    %646 = vmatprep.subr.mxu0 0.0
    %647 = vmatpush1.msra.mxu0 0.0
    %648 = vmatprep.subr.mxu0 0.0
    %649 = vmatpush1.msra.mxu0 0.0
    %650 = vmatprep.subr.mxu0 0.0
    %651 = vmatpush1.msra.mxu0 0.0
    %652 = vmatprep.subr.mxu0 0.0
    %653 = vmatpush1.msra.mxu0 0.0
    %654 = vmatprep.subr.mxu0 0.0
    %655 = vmatpush1.msra.mxu0 0.0
    %656 = vmatprep.subr.mxu0 0.0
    %657 = vmatpush1.msra.mxu0 0.0
    %658 = vmatprep.subr.mxu0 0.0
    %659 = vmatpush1.msra.mxu0 0.0
    %660 = vmatprep.subr.mxu0 0.0
    %661 = vmatpush1.msra.mxu0 0.0
    %662 = vmatprep.subr.mxu0 0.0
    %663 = vmatpush1.msra.mxu0 0.0
    %664 = vmatprep.subr.mxu0 0.0
    %665 = vmatpush1.msra.mxu0 0.0
    %666 = vmatprep.subr.mxu0 0.0
    %667 = vmatpush1.msra.mxu0 0.0
    %668 = vmatprep.subr.mxu0 0.0
    %669 = vmatpush1.msra.mxu0 0.0
    %670 = vmatprep.subr.mxu0 0.0
    %671 = vmatpush1.msra.mxu0 0.0
    %672 = vmatprep.subr.mxu0 0.0
    %673 = vmatpush1.msra.mxu0 0.0
    %674 = vmatprep.subr.mxu0 0.0
    %675 = vmatpush1.msra.mxu0 0.0
    %676 = vmatprep.subr.mxu0 0.0
    %677 = vmatpush1.msra.mxu0 0.0
    %678 = vmatprep.subr.mxu0 0.0
    %679 = vmatpush1.msra.mxu0 0.0
    %680 = vmatprep.subr.mxu0 0.0
    %681 = vmatpush1.msra.mxu0 0.0
    %682 = vmatprep.subr.mxu0 0.0
    %683 = vmatpush1.msra.mxu0 0.0
    %684 = vmatprep.subr.mxu0 0.0
    %685 = vmatpush1.msra.mxu0 0.0
    %686 = vmatprep.subr.mxu0 0.0
    %687 = vmatpush1.msra.mxu0 0.0
    %688 = vmatprep.subr.mxu0 0.0
    %689 = vmatpush1.msra.mxu0 0.0
    %690 = vmatprep.subr.mxu0 0.0
    %691 = vmatpush1.msra.mxu0 0.0
    %692 = vmatprep.subr.mxu0 0.0
    %693 = vmatpush1.msra.mxu0 0.0
    %694 = vmatprep.subr.mxu0 0.0
    %695 = vmatpush1.msra.mxu0 0.0
    %696 = vmatprep.mubr.f32.mxu0 0.0
    %697 = vmatmul.mubr.f32.gmra.mrb[0].mxu0 %v546
    %v698 = vpop.f32.mrb[0].mxu0
    %v699 = vadd.f32 0.0, %v698
    %v700 = vpop.f32.mrb[0].mxu0
    %v701 = vadd.f32 0.0, %v700
    %702 = vdwg.mxu0
    %v703 = vld [vmem:[%s5] sm:$0xf]
    %705 = vset.pattern.permute.xlu0 0
    %706 = vperm.xlu0 %705, %v703
    %v707 = vpop.permute.xlu0 %706
    %v709 = vmul.f32 %v628, %v707
    %v710 = vmul.f32 %v630, %v707
    %v711 = vmul.f32 %v699, %v707
    %v712 = vmul.f32 %v701, %v707
    %v713 = vld [vmem:[%s6] sm:$0xf]
    %715 = vset.pattern.permute.xlu0 0
    %716 = vperm.xlu0 %715, %v713
    %v717 = vpop.permute.xlu0 %716
    %v719 = vadd.f32 %v709, %v717
    %v720 = vadd.f32 %v710, %v717
    %v721 = vadd.f32 %v711, %v717
    %v722 = vadd.f32 %v712, %v717
    %v723 = vmax.f32 %v719, 0.0
    %v724 = vmax.f32 %v720, 0.0
    %v725 = vmax.f32 %v721, 0.0
    %v726 = vmax.f32 %v722, 0.0
    %727 = vrot.lane.b32.xlu0 %v723, 17
    %v728 = vpop.permute.xlu0 %727
    %729 = vrot.lane.b32.xlu0 %v724, 17
    %v730 = vpop.permute.xlu0 %729
    %731 = vrot.lane.b32.xlu0 %v725, 17
    %v732 = vpop.permute.xlu0 %731
    %733 = vrot.lane.b32.xlu0 %v726, 17
    %v734 = vpop.permute.xlu0 %733
    %v735 = vsel %vm97, %v732, %v734
    %v736 = vsel %vm97, %v730, %v732
    %v737 = vsel %vm97, %v728, %v730
    %v738 = vsel %vm97, %v734, %v728
    %v739 = vld [vmem:[#allocation3] ss:$8 sm:$0xf]
    %v741 = vlaneseq
    %v742 = vshrl.u32 %v741, 7
    %v743 = vsub.s32 0, %v742
    %v744 = vrot.slane %v739, %v743
    %v745 = vlaneseq
    %v746 = vshrl.u32 %v745, 7
    %v747 = vsub.s32 1, %v746
    %v748 = vrot.slane %v739, %v747
    %v749 = vlaneseq
    %v750 = vshrl.u32 %v749, 7
    %v751 = vsub.s32 2, %v750
    %v752 = vrot.slane %v739, %v751
    %v753 = vlaneseq
    %v754 = vshrl.u32 %v753, 7
    %v755 = vsub.s32 3, %v754
    %v756 = vrot.slane %v739, %v755
    %v761 = vmul.f32 %v738, %v744
    %v762 = vmul.f32 %v737, %v748
    %v763 = vmul.f32 %v736, %v752
    %v764 = vmul.f32 %v735, %v756
    %765 = vst [vmem:[#allocation2] sm:$0xf] %v761
    %766 = vst [vmem:[#allocation2 + $0x8] sm:$0xf] %v762
    %767 = vst [vmem:[#allocation2 + $0x10] sm:$0xf] %v763
    %768 = vst [vmem:[#allocation2 + $0x18] sm:$0xf] %v764
    %769 = vrot.lane.b32.xlu0 %v723, 16
    %v770 = vpop.permute.xlu0 %769
    %771 = vrot.lane.b32.xlu0 %v724, 16
    %v772 = vpop.permute.xlu0 %771
    %773 = vrot.lane.b32.xlu0 %v725, 16
    %v774 = vpop.permute.xlu0 %773
    %775 = vrot.lane.b32.xlu0 %v726, 16
    %v776 = vpop.permute.xlu0 %775
    %v777 = vsel %vm140, %v774, %v776
    %v778 = vsel %vm140, %v772, %v774
    %v779 = vsel %vm140, %v770, %v772
    %v780 = vsel %vm140, %v776, %v770
    %v781 = vld [vmem:[%s145] ss:$8 sm:$0xf]
    %v783 = vlaneseq
    %v784 = vshrl.u32 %v783, 7
    %v785 = vsub.s32 0, %v784
    %v786 = vrot.slane %v781, %v785
    %v787 = vlaneseq
    %v788 = vshrl.u32 %v787, 7
    %v789 = vsub.s32 1, %v788
    %v790 = vrot.slane %v781, %v789
    %v791 = vlaneseq
    %v792 = vshrl.u32 %v791, 7
    %v793 = vsub.s32 2, %v792
    %v794 = vrot.slane %v781, %v793
    %v795 = vlaneseq
    %v796 = vshrl.u32 %v795, 7
    %v797 = vsub.s32 3, %v796
    %v798 = vrot.slane %v781, %v797
    %v803 = vmul.f32 %v780, %v786
    %v804 = vmul.f32 %v779, %v790
    %v805 = vmul.f32 %v778, %v794
    %v806 = vmul.f32 %v777, %v798
    %v811 = vrot.slane %v803, 4
    %v812 = vrot.slane %v804, 4
    %v813 = vrot.slane %v805, 4
    %v814 = vrot.slane %v806, 4
    %819 = vst [vmem:[#allocation2] sm:$0xf0] %v811
    %820 = vst [vmem:[#allocation2 + $0x8] sm:$0xf0] %v812
    %821 = vst [vmem:[#allocation2 + $0x10] sm:$0xf0] %v813
    %822 = vst [vmem:[#allocation2 + $0x18] sm:$0xf0] %v814
    %823 = vrot.lane.b32.xlu0 %v723, 15
    %v824 = vpop.permute.xlu0 %823
    %825 = vrot.lane.b32.xlu0 %v724, 15
    %v826 = vpop.permute.xlu0 %825
    %827 = vrot.lane.b32.xlu0 %v725, 15
    %v828 = vpop.permute.xlu0 %827
    %829 = vrot.lane.b32.xlu0 %v726, 15
    %v830 = vpop.permute.xlu0 %829
    %v831 = vsel %vm196, %v828, %v830
    %v832 = vsel %vm196, %v826, %v828
    %v833 = vsel %vm196, %v824, %v826
    %v834 = vsel %vm196, %v830, %v824
    %v835 = vld [vmem:[%s201] ss:$8 sm:$0xf]
    %v837 = vlaneseq
    %v838 = vshrl.u32 %v837, 7
    %v839 = vsub.s32 0, %v838
    %v840 = vrot.slane %v835, %v839
    %v841 = vlaneseq
    %v842 = vshrl.u32 %v841, 7
    %v843 = vsub.s32 1, %v842
    %v844 = vrot.slane %v835, %v843
    %v845 = vlaneseq
    %v846 = vshrl.u32 %v845, 7
    %v847 = vsub.s32 2, %v846
    %v848 = vrot.slane %v835, %v847
    %v849 = vlaneseq
    %v850 = vshrl.u32 %v849, 7
    %v851 = vsub.s32 3, %v850
    %v852 = vrot.slane %v835, %v851
    %v857 = vmul.f32 %v834, %v840
    %v858 = vmul.f32 %v833, %v844
    %v859 = vmul.f32 %v832, %v848
    %v860 = vmul.f32 %v831, %v852
    %861 = vst [vmem:[#allocation2 + $0x20] sm:$0xf] %v857
    %862 = vst [vmem:[#allocation2 + $0x28] sm:$0xf] %v858
    %863 = vst [vmem:[#allocation2 + $0x30] sm:$0xf] %v859
    %864 = vst [vmem:[#allocation2 + $0x38] sm:$0xf] %v860
    %865 = vrot.lane.b32.xlu0 %v723, 1
    %v866 = vpop.permute.xlu0 %865
    %867 = vrot.lane.b32.xlu0 %v724, 1
    %v868 = vpop.permute.xlu0 %867
    %869 = vrot.lane.b32.xlu0 %v725, 1
    %v870 = vpop.permute.xlu0 %869
    %871 = vrot.lane.b32.xlu0 %v726, 1
    %v872 = vpop.permute.xlu0 %871
    %v873 = vsel %vm240, %v870, %v872
    %v874 = vsel %vm240, %v868, %v870
    %v875 = vsel %vm240, %v866, %v868
    %v876 = vsel %vm240, %v872, %v866
    %v877 = vld [vmem:[%s245] ss:$8 sm:$0xf]
    %v879 = vlaneseq
    %v880 = vshrl.u32 %v879, 7
    %v881 = vsub.s32 0, %v880
    %v882 = vrot.slane %v877, %v881
    %v883 = vlaneseq
    %v884 = vshrl.u32 %v883, 7
    %v885 = vsub.s32 1, %v884
    %v886 = vrot.slane %v877, %v885
    %v887 = vlaneseq
    %v888 = vshrl.u32 %v887, 7
    %v889 = vsub.s32 2, %v888
    %v890 = vrot.slane %v877, %v889
    %v891 = vlaneseq
    %v892 = vshrl.u32 %v891, 7
    %v893 = vsub.s32 3, %v892
    %v894 = vrot.slane %v877, %v893
    %v899 = vmul.f32 %v876, %v882
    %v900 = vmul.f32 %v875, %v886
    %v901 = vmul.f32 %v874, %v890
    %v902 = vmul.f32 %v873, %v894
    %v907 = vrot.slane %v899, 4
    %v908 = vrot.slane %v900, 4
    %v909 = vrot.slane %v901, 4
    %v910 = vrot.slane %v902, 4
    %915 = vst [vmem:[#allocation2 + $0x20] sm:$0xf0] %v907
    %916 = vst [vmem:[#allocation2 + $0x28] sm:$0xf0] %v908
    %917 = vst [vmem:[#allocation2 + $0x30] sm:$0xf0] %v909
    %918 = vst [vmem:[#allocation2 + $0x38] sm:$0xf0] %v910
    %v919 = vld [vmem:[%s288] ss:$8 sm:$0xf]
    %v921 = vlaneseq
    %v922 = vshrl.u32 %v921, 7
    %v923 = vsub.s32 0, %v922
    %v924 = vrot.slane %v919, %v923
    %v925 = vlaneseq
    %v926 = vshrl.u32 %v925, 7
    %v927 = vsub.s32 1, %v926
    %v928 = vrot.slane %v919, %v927
    %v929 = vlaneseq
    %v930 = vshrl.u32 %v929, 7
    %v931 = vsub.s32 2, %v930
    %v932 = vrot.slane %v919, %v931
    %v933 = vlaneseq
    %v934 = vshrl.u32 %v933, 7
    %v935 = vsub.s32 3, %v934
    %v936 = vrot.slane %v919, %v935
    %v941 = vmul.f32 %v723, %v924
    %v942 = vmul.f32 %v724, %v928
    %v943 = vmul.f32 %v725, %v932
    %v944 = vmul.f32 %v726, %v936
    %945 = vst [vmem:[#allocation2 + $0x40] sm:$0xf] %v941
    %946 = vst [vmem:[#allocation2 + $0x48] sm:$0xf] %v942
    %947 = vst [vmem:[#allocation2 + $0x50] sm:$0xf] %v943
    %948 = vst [vmem:[#allocation2 + $0x58] sm:$0xf] %v944
    %949 = vrot.lane.b32.xlu0 %v723, 127
    %v950 = vpop.permute.xlu0 %949
    %951 = vrot.lane.b32.xlu0 %v724, 127
    %v952 = vpop.permute.xlu0 %951
    %953 = vrot.lane.b32.xlu0 %v725, 127
    %v954 = vpop.permute.xlu0 %953
    %955 = vrot.lane.b32.xlu0 %v726, 127
    %v956 = vpop.permute.xlu0 %955
    %v957 = vsel %vm331, %v954, %v956
    %v958 = vsel %vm331, %v952, %v954
    %v959 = vsel %vm331, %v950, %v952
    %v960 = vsel %vm331, %v956, %v950
    %v961 = vld [vmem:[%s336] ss:$8 sm:$0xf]
    %v963 = vlaneseq
    %v964 = vshrl.u32 %v963, 7
    %v965 = vsub.s32 0, %v964
    %v966 = vrot.slane %v961, %v965
    %v967 = vlaneseq
    %v968 = vshrl.u32 %v967, 7
    %v969 = vsub.s32 1, %v968
    %v970 = vrot.slane %v961, %v969
    %v971 = vlaneseq
    %v972 = vshrl.u32 %v971, 7
    %v973 = vsub.s32 2, %v972
    %v974 = vrot.slane %v961, %v973
    %v975 = vlaneseq
    %v976 = vshrl.u32 %v975, 7
    %v977 = vsub.s32 3, %v976
    %v978 = vrot.slane %v961, %v977
    %v983 = vmul.f32 %v959, %v966
    %v984 = vmul.f32 %v958, %v970
    %v985 = vmul.f32 %v957, %v974
    %v986 = vmul.f32 %v960, %v978
    %v991 = vrot.slane %v983, 4
    %v992 = vrot.slane %v984, 4
    %v993 = vrot.slane %v985, 4
    %v994 = vrot.slane %v986, 4
    %999 = vst [vmem:[#allocation2 + $0x40] sm:$0xf0] %v991
    %1000 = vst [vmem:[#allocation2 + $0x48] sm:$0xf0] %v992
    %1001 = vst [vmem:[#allocation2 + $0x50] sm:$0xf0] %v993
    %1002 = vst [vmem:[#allocation2 + $0x58] sm:$0xf0] %v994
    %1003 = vrot.lane.b32.xlu0 %v723, 113
    %v1004 = vpop.permute.xlu0 %1003
    %1005 = vrot.lane.b32.xlu0 %v724, 113
    %v1006 = vpop.permute.xlu0 %1005
    %1007 = vrot.lane.b32.xlu0 %v725, 113
    %v1008 = vpop.permute.xlu0 %1007
    %1009 = vrot.lane.b32.xlu0 %v726, 113
    %v1010 = vpop.permute.xlu0 %1009
    %v1011 = vsel %vm387, %v1008, %v1010
    %v1012 = vsel %vm387, %v1006, %v1008
    %v1013 = vsel %vm387, %v1004, %v1006
    %v1014 = vsel %vm387, %v1010, %v1004
    %v1015 = vld [vmem:[%s392] ss:$8 sm:$0xf]
    %v1017 = vlaneseq
    %v1018 = vshrl.u32 %v1017, 7
    %v1019 = vsub.s32 0, %v1018
    %v1020 = vrot.slane %v1015, %v1019
    %v1021 = vlaneseq
    %v1022 = vshrl.u32 %v1021, 7
    %v1023 = vsub.s32 1, %v1022
    %v1024 = vrot.slane %v1015, %v1023
    %v1025 = vlaneseq
    %v1026 = vshrl.u32 %v1025, 7
    %v1027 = vsub.s32 2, %v1026
    %v1028 = vrot.slane %v1015, %v1027
    %v1029 = vlaneseq
    %v1030 = vshrl.u32 %v1029, 7
    %v1031 = vsub.s32 3, %v1030
    %v1032 = vrot.slane %v1015, %v1031
    %v1037 = vmul.f32 %v1013, %v1020
    %v1038 = vmul.f32 %v1012, %v1024
    %v1039 = vmul.f32 %v1011, %v1028
    %v1040 = vmul.f32 %v1014, %v1032
    %1041 = vst [vmem:[#allocation2 + $0x60] sm:$0xf] %v1037
    %1042 = vst [vmem:[#allocation2 + $0x68] sm:$0xf] %v1038
    %1043 = vst [vmem:[#allocation2 + $0x70] sm:$0xf] %v1039
    %1044 = vst [vmem:[#allocation2 + $0x78] sm:$0xf] %v1040
    %1045 = vrot.lane.b32.xlu0 %v723, 112
    %v1046 = vpop.permute.xlu0 %1045
    %1047 = vrot.lane.b32.xlu0 %v724, 112
    %v1048 = vpop.permute.xlu0 %1047
    %1049 = vrot.lane.b32.xlu0 %v725, 112
    %v1050 = vpop.permute.xlu0 %1049
    %1051 = vrot.lane.b32.xlu0 %v726, 112
    %v1052 = vpop.permute.xlu0 %1051
    %v1053 = vsel %vm431, %v1050, %v1052
    %v1054 = vsel %vm431, %v1048, %v1050
    %v1055 = vsel %vm431, %v1046, %v1048
    %v1056 = vsel %vm431, %v1052, %v1046
    %v1057 = vld [vmem:[%s436] ss:$8 sm:$0xf]
    %v1059 = vlaneseq
    %v1060 = vshrl.u32 %v1059, 7
    %v1061 = vsub.s32 0, %v1060
    %v1062 = vrot.slane %v1057, %v1061
    %v1063 = vlaneseq
    %v1064 = vshrl.u32 %v1063, 7
    %v1065 = vsub.s32 1, %v1064
    %v1066 = vrot.slane %v1057, %v1065
    %v1067 = vlaneseq
    %v1068 = vshrl.u32 %v1067, 7
    %v1069 = vsub.s32 2, %v1068
    %v1070 = vrot.slane %v1057, %v1069
    %v1071 = vlaneseq
    %v1072 = vshrl.u32 %v1071, 7
    %v1073 = vsub.s32 3, %v1072
    %v1074 = vrot.slane %v1057, %v1073
    %v1079 = vmul.f32 %v1055, %v1062
    %v1080 = vmul.f32 %v1054, %v1066
    %v1081 = vmul.f32 %v1053, %v1070
    %v1082 = vmul.f32 %v1056, %v1074
    %v1087 = vrot.slane %v1079, 4
    %v1088 = vrot.slane %v1080, 4
    %v1089 = vrot.slane %v1081, 4
    %v1090 = vrot.slane %v1082, 4
    %1095 = vst [vmem:[#allocation2 + $0x60] sm:$0xf0] %v1087
    %1096 = vst [vmem:[#allocation2 + $0x68] sm:$0xf0] %v1088
    %1097 = vst [vmem:[#allocation2 + $0x70] sm:$0xf0] %v1089
    %1098 = vst [vmem:[#allocation2 + $0x78] sm:$0xf0] %v1090
    %1099 = vrot.lane.b32.xlu0 %v723, 111
    %v1100 = vpop.permute.xlu0 %1099
    %1101 = vrot.lane.b32.xlu0 %v724, 111
    %v1102 = vpop.permute.xlu0 %1101
    %1103 = vrot.lane.b32.xlu0 %v725, 111
    %v1104 = vpop.permute.xlu0 %1103
    %1105 = vrot.lane.b32.xlu0 %v726, 111
    %v1106 = vpop.permute.xlu0 %1105
    %v1107 = vsel %vm487, %v1104, %v1106
    %v1108 = vsel %vm487, %v1102, %v1104
    %v1109 = vsel %vm487, %v1100, %v1102
    %v1110 = vsel %vm487, %v1106, %v1100
    %v1111 = vld [vmem:[%s492] ss:$8 sm:$0xf]
    %v1113 = vlaneseq
    %v1114 = vshrl.u32 %v1113, 7
    %v1115 = vsub.s32 0, %v1114
    %v1116 = vrot.slane %v1111, %v1115
    %v1117 = vlaneseq
    %v1118 = vshrl.u32 %v1117, 7
    %v1119 = vsub.s32 1, %v1118
    %v1120 = vrot.slane %v1111, %v1119
    %v1121 = vlaneseq
    %v1122 = vshrl.u32 %v1121, 7
    %v1123 = vsub.s32 2, %v1122
    %v1124 = vrot.slane %v1111, %v1123
    %v1125 = vlaneseq
    %v1126 = vshrl.u32 %v1125, 7
    %v1127 = vsub.s32 3, %v1126
    %v1128 = vrot.slane %v1111, %v1127
    %v1133 = vmul.f32 %v1109, %v1116
    %v1134 = vmul.f32 %v1108, %v1120
    %v1135 = vmul.f32 %v1107, %v1124
    %v1136 = vmul.f32 %v1110, %v1128
    %1137 = vst [vmem:[#allocation2 + $0x80] sm:$0xf] %v1133
    %1138 = vst [vmem:[#allocation2 + $0x88] sm:$0xf] %v1134
    %1139 = vst [vmem:[#allocation2 + $0x90] sm:$0xf] %v1135
    %1140 = vst [vmem:[#allocation2 + $0x98] sm:$0xf] %v1136
    %v1141 = vld [vmem:[%s7] sm:$0xf]
    %v1142 = vld [vmem:[#allocation2] sm:$0xff]
    %v1143 = vld [vmem:[#allocation2 + $0x8] sm:$0xff]
    %v1144 = vld [vmem:[#allocation2 + $0x10] sm:$0xff]
    %v1145 = vld [vmem:[#allocation2 + $0x18] sm:$0xff]
    %v1146 = vld [vmem:[#allocation2 + $0x20] sm:$0xff]
    %v1147 = vld [vmem:[#allocation2 + $0x28] sm:$0xff]
    %v1148 = vld [vmem:[#allocation2 + $0x30] sm:$0xff]
    %v1149 = vld [vmem:[#allocation2 + $0x38] sm:$0xff]
    %v1150 = vld [vmem:[#allocation2 + $0x40] sm:$0xff]
    %v1151 = vld [vmem:[#allocation2 + $0x48] sm:$0xff]
    %v1152 = vld [vmem:[#allocation2 + $0x50] sm:$0xff]
    %v1153 = vld [vmem:[#allocation2 + $0x58] sm:$0xff]
    %v1154 = vld [vmem:[#allocation2 + $0x60] sm:$0xff]
    %v1155 = vld [vmem:[#allocation2 + $0x68] sm:$0xff]
    %v1156 = vld [vmem:[#allocation2 + $0x70] sm:$0xff]
    %v1157 = vld [vmem:[#allocation2 + $0x78] sm:$0xff]
    %v1158 = vld [vmem:[#allocation2 + $0x80] sm:$0xf]
    %v1159 = vld [vmem:[#allocation2 + $0x88] sm:$0xf]
    %v1160 = vld [vmem:[#allocation2 + $0x90] sm:$0xf]
    %v1161 = vld [vmem:[#allocation2 + $0x98] sm:$0xf]
    %v1162 = vld [vmem:[%s8] sm:$0xf]
    %1164 = vset.pattern.permute.xlu0 0
    %1165 = vperm.xlu0 %1164, %v1162
    %v1166 = vpop.permute.xlu0 %1165
    %v1169 = vsel %vm544, %v1141, 0
    %v1172 = vsel %vm548, %v1158, 0
    %v1175 = vsel %vm548, %v1159, 0
    %v1178 = vsel %vm548, %v1160, 0
    %v1181 = vsel %vm548, %v1161, 0
    %1183 = vmatprep.subr.mxu0 %v1143
    %1184 = vmatpush1.msra.mxu0 %v1142
    %1185 = vmatprep.subr.mxu0 %v1147
    %1186 = vmatpush1.msra.mxu0 %v1146
    %1187 = vmatprep.subr.mxu0 %v1151
    %1188 = vmatpush1.msra.mxu0 %v1150
    %1189 = vmatprep.subr.mxu0 %v1155
    %1190 = vmatpush1.msra.mxu0 %v1154
    %1191 = vmatprep.subr.mxu0 %v1175
    %1192 = vmatpush1.msra.mxu0 %v1172
    %1193 = vmatprep.subr.mxu0 0.0
    %1194 = vmatpush1.msra.mxu0 0.0
    %1195 = vmatprep.subr.mxu0 0.0
    %1196 = vmatpush1.msra.mxu0 0.0
    %1197 = vmatprep.subr.mxu0 0.0
    %1198 = vmatpush1.msra.mxu0 0.0
    %1199 = vmatprep.subr.mxu0 0.0
    %1200 = vmatpush1.msra.mxu0 0.0
    %1201 = vmatprep.subr.mxu0 0.0
    %1202 = vmatpush1.msra.mxu0 0.0
    %1203 = vmatprep.subr.mxu0 0.0
    %1204 = vmatpush1.msra.mxu0 0.0
    %1205 = vmatprep.subr.mxu0 0.0
    %1206 = vmatpush1.msra.mxu0 0.0
    %1207 = vmatprep.subr.mxu0 0.0
    %1208 = vmatpush1.msra.mxu0 0.0
    %1209 = vmatprep.subr.mxu0 0.0
    %1210 = vmatpush1.msra.mxu0 0.0
    %1211 = vmatprep.subr.mxu0 0.0
    %1212 = vmatpush1.msra.mxu0 0.0
    %1213 = vmatprep.subr.mxu0 0.0
    %1214 = vmatpush1.msra.mxu0 0.0
    %1215 = vmatprep.subr.mxu0 0.0
    %1216 = vmatpush1.msra.mxu0 0.0
    %1217 = vmatprep.subr.mxu0 0.0
    %1218 = vmatpush1.msra.mxu0 0.0
    %1219 = vmatprep.subr.mxu0 0.0
    %1220 = vmatpush1.msra.mxu0 0.0
    %1221 = vmatprep.subr.mxu0 0.0
    %1222 = vmatpush1.msra.mxu0 0.0
    %1223 = vmatprep.subr.mxu0 0.0
    %1224 = vmatpush1.msra.mxu0 0.0
    %1225 = vmatprep.subr.mxu0 0.0
    %1226 = vmatpush1.msra.mxu0 0.0
    %1227 = vmatprep.subr.mxu0 0.0
    %1228 = vmatpush1.msra.mxu0 0.0
    %1229 = vmatprep.subr.mxu0 0.0
    %1230 = vmatpush1.msra.mxu0 0.0
    %1231 = vmatprep.subr.mxu0 0.0
    %1232 = vmatpush1.msra.mxu0 0.0
    %1233 = vmatprep.subr.mxu0 0.0
    %1234 = vmatpush1.msra.mxu0 0.0
    %1235 = vmatprep.subr.mxu0 0.0
    %1236 = vmatpush1.msra.mxu0 0.0
    %1237 = vmatprep.subr.mxu0 0.0
    %1238 = vmatpush1.msra.mxu0 0.0
    %1239 = vmatprep.subr.mxu0 0.0
    %1240 = vmatpush1.msra.mxu0 0.0
    %1241 = vmatprep.subr.mxu0 0.0
    %1242 = vmatpush1.msra.mxu0 0.0
    %1243 = vmatprep.subr.mxu0 0.0
    %1244 = vmatpush1.msra.mxu0 0.0
    %1245 = vmatprep.subr.mxu0 0.0
    %1246 = vmatpush1.msra.mxu0 0.0
    %1247 = vmatprep.mubr.f32.mxu0 0.0
    %1248 = vmatmul.mubr.f32.gmra.mrb[0].mxu0 %v1169
    %v1249 = vpop.f32.mrb[0].mxu0
    %v1250 = vadd.f32 %v1166, %v1249
    %v1251 = vpop.f32.mrb[0].mxu0
    %v1252 = vadd.f32 %v1166, %v1251
    %1253 = vdwg.mxu0
    %1254 = vmatprep.subr.mxu0 %v1145
    %1255 = vmatpush1.msra.mxu0 %v1144
    %1256 = vmatprep.subr.mxu0 %v1149
    %1257 = vmatpush1.msra.mxu0 %v1148
    %1258 = vmatprep.subr.mxu0 %v1153
    %1259 = vmatpush1.msra.mxu0 %v1152
    %1260 = vmatprep.subr.mxu0 %v1157
    %1261 = vmatpush1.msra.mxu0 %v1156
    %1262 = vmatprep.subr.mxu0 %v1181
    %1263 = vmatpush1.msra.mxu0 %v1178
    %1264 = vmatprep.subr.mxu0 0.0
    %1265 = vmatpush1.msra.mxu0 0.0
    %1266 = vmatprep.subr.mxu0 0.0
    %1267 = vmatpush1.msra.mxu0 0.0
    %1268 = vmatprep.subr.mxu0 0.0
    %1269 = vmatpush1.msra.mxu0 0.0
    %1270 = vmatprep.subr.mxu0 0.0
    %1271 = vmatpush1.msra.mxu0 0.0
    %1272 = vmatprep.subr.mxu0 0.0
    %1273 = vmatpush1.msra.mxu0 0.0
    %1274 = vmatprep.subr.mxu0 0.0
    %1275 = vmatpush1.msra.mxu0 0.0
    %1276 = vmatprep.subr.mxu0 0.0
    %1277 = vmatpush1.msra.mxu0 0.0
    %1278 = vmatprep.subr.mxu0 0.0
    %1279 = vmatpush1.msra.mxu0 0.0
    %1280 = vmatprep.subr.mxu0 0.0
    %1281 = vmatpush1.msra.mxu0 0.0
    %1282 = vmatprep.subr.mxu0 0.0
    %1283 = vmatpush1.msra.mxu0 0.0
    %1284 = vmatprep.subr.mxu0 0.0
    %1285 = vmatpush1.msra.mxu0 0.0
    %1286 = vmatprep.subr.mxu0 0.0
    %1287 = vmatpush1.msra.mxu0 0.0
    %1288 = vmatprep.subr.mxu0 0.0
    %1289 = vmatpush1.msra.mxu0 0.0
    %1290 = vmatprep.subr.mxu0 0.0
    %1291 = vmatpush1.msra.mxu0 0.0
    %1292 = vmatprep.subr.mxu0 0.0
    %1293 = vmatpush1.msra.mxu0 0.0
    %1294 = vmatprep.subr.mxu0 0.0
    %1295 = vmatpush1.msra.mxu0 0.0
    %1296 = vmatprep.subr.mxu0 0.0
    %1297 = vmatpush1.msra.mxu0 0.0
    %1298 = vmatprep.subr.mxu0 0.0
    %1299 = vmatpush1.msra.mxu0 0.0
    %1300 = vmatprep.subr.mxu0 0.0
    %1301 = vmatpush1.msra.mxu0 0.0
    %1302 = vmatprep.subr.mxu0 0.0
    %1303 = vmatpush1.msra.mxu0 0.0
    %1304 = vmatprep.subr.mxu0 0.0
    %1305 = vmatpush1.msra.mxu0 0.0
    %1306 = vmatprep.subr.mxu0 0.0
    %1307 = vmatpush1.msra.mxu0 0.0
    %1308 = vmatprep.subr.mxu0 0.0
    %1309 = vmatpush1.msra.mxu0 0.0
    %1310 = vmatprep.subr.mxu0 0.0
    %1311 = vmatpush1.msra.mxu0 0.0
    %1312 = vmatprep.subr.mxu0 0.0
    %1313 = vmatpush1.msra.mxu0 0.0
    %1314 = vmatprep.subr.mxu0 0.0
    %1315 = vmatpush1.msra.mxu0 0.0
    %1316 = vmatprep.subr.mxu0 0.0
    %1317 = vmatpush1.msra.mxu0 0.0
    %1318 = vmatprep.mubr.f32.mxu0 0.0
    %1319 = vmatmul.mubr.f32.gmra.mrb[0].mxu0 %v1169
    %v1320 = vpop.f32.mrb[0].mxu0
    %v1321 = vadd.f32 %v1166, %v1320
    %v1322 = vpop.f32.mrb[0].mxu0
    %v1323 = vadd.f32 %v1166, %v1322
    %1324 = vdwg.mxu0
    %v1327 = vcombine.high %v47, %v47
    %v1328 = vcombine.high %v48, %v48
    %v1331 = vadd.f32 %v1250, %v47
    %v1332 = vadd.f32 %v1252, %v1327
    %v1333 = vadd.f32 %v1321, %v48
    %v1334 = vadd.f32 %v1323, %v1328
    %v1339 = vcombine.low %v1331, %v1332
    %v1340 = vcombine.low %v1333, %v1334
    %1343 = vst [vmem:[#allocation6] sm:$0xff] %v1339
    %1344 = vst [vmem:[#allocation6 + $0x8] sm:$0xff] %v1340
    // Predicated region
    $region42: #{tpu_custom_call.1} parent=1 // pred_check
      _
    $region43: #{tpu_custom_call.1} parent=1 // pred_check_branch
      %1346 = sbr.rel (0) target = $region45
    $region44: #{tpu_custom_call.1} parent=1 // pred_region
      %s1348 = ssub.s32 256, 256
      %1349 = vsyncadd [#allocation5], %s1348
      %s1351 = sshll.u32 [#allocation6], 4
      %s1352 = int_to_ptr.vmem [resolvable:$true] %s1351
      %1354 = dma.vmem_to_hbm [thread:$0]  %s1352, 256, %s9, [#allocation5]
    $region45: #{tpu_custom_call.1} parent=1 // pred_fallthru
      _
    // Predicated region
    $region46: #{tpu_custom_call.1} parent=1 // pred_check
      _
    $region47: #{tpu_custom_call.1} parent=1 // pred_check_branch
      %1356 = sbr.rel (0) target = $region49
    $region48: #{tpu_custom_call.1} parent=1 // pred_region
      %1357 = dma.done [#allocation5], 256
    $region49: #{tpu_custom_call.1} parent=1 // pred_fallthru
      _
    %1358 = vsyncpa [#allocation4], 1
    %1359 = vsyncpa [#allocation5], 1

</llo_original>
